<compile_context>
chip_gen: v7x
topology: tpu7x:2x2x1
jax: 0.10.0
libtpu: 0.0.40
codegen_flags: <defaults>
</compile_context>

<pallas_src>
import functools

import jax
import jax.numpy as jnp
from jax.experimental import pallas as pl
from jax.experimental.pallas import tpu as pltpu

LANE = 128  # lane width / feature padding


def _round_up(v, m):
    return (v + m - 1) // m * m


def _pick_tile(num_nodes):
    # 256-wide tiles match the v6e/v7x 256x256 MXU and halve per-step
    # overhead; keep >= 2 dst tiles so both v7x TensorCores stay busy.
    return 256 if _round_up(num_nodes, 256) >= 512 else 128


def rgcn_kernel(nnz_ref, x_dst_ref, x_src_ref, a_ref, wstack_ref, wroot_ref,
                b_ref, deginv_ref, out_ref, msg_ref, *, num_relations, d_pad):
    """One (dst tile i, src tile k) step of the fused RGCN layer."""
    i = pl.program_id(0)
    k = pl.program_id(1)
    n_k = pl.num_programs(1)

    @pl.when(k == 0)
    def _init():
        msg_ref[...] = jnp.zeros_like(msg_ref)

    # Hot loop: only the R adjacency matmuls, accumulated in f32.  Tiles with
    # no edges (most tiles on real sparse graphs) are skipped entirely.
    @pl.when(nnz_ref[i * n_k + k] != 0)
    def _accumulate():
        x_src = x_src_ref[...]                                   # [TK, Dp] bf16
        for r in range(num_relations):                           # independent slab writes
            a_r = a_ref[r].astype(jnp.bfloat16)                  # int8 counts -> bf16 (exact)
            msg_ref[:, r * d_pad:(r + 1) * d_pad] += jnp.dot(
                a_r, x_src, preferred_element_type=jnp.float32)  # [TN, Dp] f32

    # Finalize once per dst tile: exact f32 1/deg scaling, ONE stacked weight
    # matmul, root transform + bias, lane-dense store.
    @pl.when(k == n_k - 1)
    def _finalize():
        m = (msg_ref[...] * deginv_ref[...]).astype(jnp.bfloat16)   # [TN, R*Dp]
        msgs = jnp.dot(m, wstack_ref[...],
                       preferred_element_type=jnp.float32)          # [TN, Dp]
        root = jnp.dot(x_dst_ref[...], wroot_ref[...],
                       preferred_element_type=jnp.float32)           # [TN, Dp]
        out_ref[...] = (msgs + root + b_ref[...]).astype(out_ref.dtype)


@jax.jit
def rgcn_conv_pallas(x, nnz_map, a_blocked, deg_inv_full, w_stack, w_root_p,
                     bias_p):
    """x: [N, D] f32; nnz_map: [n_i*n_k] i32; a_blocked: [n_i,n_k,R,TN,TK] i8;
    deg_inv_full: [Np, R*Dp] f32; w_stack: [R*Dp, Dp] bf16; w_root_p: [Dp, Dp]
    bf16; bias_p: [1, Dp] f32.  Returns [N, D] f32."""
    n, d = x.shape
    n_i, n_k, num_rel, tile_n, tile_k = a_blocked.shape
    d_pad = w_root_p.shape[0]
    n_pad = n_i * tile_n

    # Pad node features to [Np, Dp] bf16 (zero padding contributes nothing).
    x_p = jnp.zeros((n_pad, d_pad), jnp.bfloat16)
    x_p = x_p.at[:n, :d].set(x.astype(jnp.bfloat16))

    kernel = functools.partial(rgcn_kernel,
                               num_relations=num_rel, d_pad=d_pad)

    out_p = pl.pallas_call(
        kernel,
        out_shape=jax.ShapeDtypeStruct((n_pad, d_pad), jnp.float32),
        grid_spec=pltpu.PrefetchScalarGridSpec(
            num_scalar_prefetch=1,                       # nnz tile bitmap (SMEM)
            grid=(n_i, n_k),
            in_specs=[
                pl.BlockSpec((tile_n, d_pad), lambda i, k, nnz: (i, 0)),   # x (dst / root)
                pl.BlockSpec((tile_k, d_pad), lambda i, k, nnz: (k, 0)),   # x (src / messages)
                pl.BlockSpec((None, None, num_rel, tile_n, tile_k),
                             lambda i, k, nnz: (i, k, 0, 0, 0)),           # A counts, blocked, int8
                pl.BlockSpec((num_rel * d_pad, d_pad),
                             lambda i, k, nnz: (0, 0)),                    # W_stack
                pl.BlockSpec((d_pad, d_pad), lambda i, k, nnz: (0, 0)),    # W_root
                pl.BlockSpec((1, d_pad), lambda i, k, nnz: (0, 0)),        # bias
                pl.BlockSpec((tile_n, num_rel * d_pad),
                             lambda i, k, nnz: (i, 0)),                    # 1/deg (f32, exact)
            ],
            out_specs=pl.BlockSpec((tile_n, d_pad), lambda i, k, nnz: (i, 0)),
            scratch_shapes=[pltpu.VMEM((tile_n, num_rel * d_pad), jnp.float32)],
        ),
        compiler_params=pltpu.CompilerParams(
            dimension_semantics=("parallel", "arbitrary"),
            vmem_limit_bytes=32 * 1024 * 1024,
        ),
    )(nnz_map, x_p, x_p, a_blocked, w_stack, w_root_p, bias_p, deg_inv_full)
    return out_p[:n, :d]


def build_graph_tensors(edge_index, edge_type, num_relations, n_pad, tile,
                        d_pad):
    """Graph-static preprocessing (run ONCE per graph, not in the hot path):
      * int8 per-relation edge-count adjacency in a blocked layout
        [n_i, n_k, R, TILE, TILE] -> one contiguous DMA per grid step,
      * exact f32 1/deg factors pre-broadcast to [Np, R*Dp],
      * per-(i,k)-tile nonzero bitmap for skipping empty tiles.
    """
    src, dst = edge_index[0], edge_index[1]
    counts = jnp.zeros((num_relations, n_pad, n_pad), jnp.int32)
    counts = counts.at[edge_type, dst, src].add(1)

    deg = counts.sum(axis=-1)                                       # [R, Np]
    deg_inv = (1.0 / jnp.maximum(deg, 1)).astype(jnp.float32)       # exact f32 mean
    deg_inv_full = jnp.broadcast_to(
        deg_inv.T[:, :, None], (n_pad, num_relations, d_pad)
    ).reshape(n_pad, num_relations * d_pad)

    n_i = n_pad // tile
    n_k = n_pad // tile
    blocked = counts.reshape(num_relations, n_i, tile, n_k, tile)
    # TODO(synk): int8 clips edge multiplicities > 127 (irrelevant for simple graphs).
    a_blocked = blocked.transpose(1, 3, 0, 2, 4).astype(jnp.int8)   # [n_i,n_k,R,T,T]
    nnz_map = (blocked.sum(axis=(0, 2, 4)) > 0).astype(jnp.int32).reshape(-1)
    return a_blocked, deg_inv_full, nnz_map


def pack_rgcn_params(w, w_root, bias, d_pad):
    """Pad weights to Dp lanes; stack the R relation weights along the
    contraction axis (W_stack = [R*Dp, Dp]); cast MXU operands to bf16."""
    num_rel, d, _ = w.shape
    w_p = jnp.zeros((num_rel, d_pad, d_pad), jnp.float32).at[:, :d, :d].set(w)
    w_stack = w_p.reshape(num_rel * d_pad, d_pad)
    w_root_p = jnp.zeros((d_pad, d_pad), jnp.float32).at[:d, :d].set(w_root)
    bias_p = jnp.zeros((1, d_pad), jnp.float32).at[0, :d].set(bias)
    return w_stack.astype(jnp.bfloat16), w_root_p.astype(jnp.bfloat16), bias_p


def gnn_rgcn_forward(inp, packed_params, graph_tensors):
    """Matches GNNRGCNConv.forward: returns (conv out, edge_index, edge_type)."""
    x, edge_index, edge_type = inp
    w_stack, w_root_p, bias_p = packed_params
    a_blocked, deg_inv_full, nnz_map = graph_tensors
    out = rgcn_conv_pallas(x, nnz_map, a_blocked, deg_inv_full,
                           w_stack, w_root_p, bias_p)
    return out, edge_index, edge_type


def rgcn_reference(x, edge_index, edge_type, w, w_root, bias, num_relations):
    """Pure-JAX f32 reference (PyG RGCNConv, aggr='mean')."""
    n = x.shape[0]
    a = jnp.zeros((num_relations, n, n), jnp.float32)
    a = a.at[edge_type, edge_index[1], edge_index[0]].add(1.0)
    deg = a.sum(axis=-1, keepdims=True)
    a = a / jnp.maximum(deg, 1.0)
    msg = jnp.einsum("rij,jd,rde->ie", a, x, w)
    return msg + x @ w_root + bias[None, :]


if __name__ == "__main__":
    # Module "params": node_emb_dim=32, num_deps=3 (relations), gnn_model='rgcn'
    num_nodes = 16
    node_emb_dim = 32
    num_deps = 3
    num_edges = 40

    key = jax.random.PRNGKey(0)
    k_x, k_src, k_dst, k_type, k_w, k_wr = jax.random.split(key, 6)

    x = jax.random.normal(k_x, (num_nodes, node_emb_dim), jnp.float32)
    src = jax.random.randint(k_src, (num_edges,), 0, num_nodes, jnp.int32)
    dst = jax.random.randint(k_dst, (num_edges,), 0, num_nodes, jnp.int32)
    edge_index = jnp.stack([src, dst], axis=0)                      # [2, E]
    edge_type = jax.random.randint(k_type, (num_edges,), 0, num_deps, jnp.int32)

    scale = (2.0 / (node_emb_dim + node_emb_dim)) ** 0.5
    w = scale * jax.random.normal(
        k_w, (num_deps, node_emb_dim, node_emb_dim), jnp.float32)
    w_root = scale * jax.random.normal(
        k_wr, (node_emb_dim, node_emb_dim), jnp.float32)
    bias = jnp.zeros((node_emb_dim,), jnp.float32)

    tile = _pick_tile(num_nodes)
    d_pad = _round_up(node_emb_dim, LANE)
    n_pad = _round_up(num_nodes, tile)

    # Graph-static preprocessing: done once, outside the forward hot path.
    graph_tensors = build_graph_tensors(
        edge_index, edge_type, num_relations=num_deps,
        n_pad=n_pad, tile=tile, d_pad=d_pad)
    packed = pack_rgcn_params(w, w_root, bias, d_pad)

    out, ei, et = gnn_rgcn_forward((x, edge_index, edge_type), packed,
                                   graph_tensors)
    jax.block_until_ready(out)
    assert out.shape == (num_nodes, node_emb_dim)

    # Sanity check against the f32 reference (bf16 x/W operands -> loose tol).
    ref = rgcn_reference(x, edge_index, edge_type, w, w_root, bias, num_deps)
    err = float(jnp.max(jnp.abs(out - ref)))
    assert err < 1e-1, f"max abs error vs f32 reference: {err}"

    print("KERNEL_OK")
</pallas_src>

<mosaic_0001>
module attributes {stable_mosaic.version = 11 : i64} {
  func.func @rgcn_kernel(%arg0: i32, %arg1: i32, %arg2: memref<1xi32, #tpu.memory_space<smem>>, %arg3: memref<128x128xbf16, #tpu.memory_space<vmem>>, %arg4: memref<128x128xbf16, #tpu.memory_space<vmem>>, %arg5: memref<1x1x3x128x128xi8, #tpu.memory_space<vmem>>, %arg6: memref<384x128xbf16, #tpu.memory_space<vmem>>, %arg7: memref<128x128xbf16, #tpu.memory_space<vmem>>, %arg8: memref<1x128xf32, #tpu.memory_space<vmem>>, %arg9: memref<128x384xf32, #tpu.memory_space<vmem>>, %arg10: memref<128x128xf32, #tpu.memory_space<vmem>>, %arg11: memref<128x384xf32, #tpu.memory_space<vmem>>) attributes {dimension_semantics = [#tpu.dimension_semantics<parallel>, #tpu.dimension_semantics<arbitrary>], iteration_bounds = array<i64: 1, 1>, scalar_prefetch = 1 : i64, scratch_operands = 1 : i64, tpu.core_type = #tpu.core_type<tc>, window_params = [{transform_indices = @transform_0, window_bounds = array<i64: 128, 128>}, {transform_indices = @transform_1, window_bounds = array<i64: 128, 128>}, {transform_indices = @transform_2, window_bounds = array<i64: 1, 1, 3, 128, 128>}, {pipeline_mode = #tpu.pipeline_mode<synchronous>, transform_indices = @transform_3, window_bounds = array<i64: 384, 128>}, {pipeline_mode = #tpu.pipeline_mode<synchronous>, transform_indices = @transform_4, window_bounds = array<i64: 128, 128>}, {pipeline_mode = #tpu.pipeline_mode<synchronous>, transform_indices = @transform_5, window_bounds = array<i64: 1, 128>}, {transform_indices = @transform_6, window_bounds = array<i64: 128, 384>}, {transform_indices = @transform_7, window_bounds = array<i64: 128, 128>}]} {
    %c0_i32 = arith.constant 0 : i32
    %0 = arith.cmpi eq, %arg1, %c0_i32 : i32
    %1 = arith.extui %0 : i1 to i32
    %c0_i32_0 = arith.constant 0 : i32
    %2 = arith.cmpi ne, %1, %c0_i32_0 : i32
    scf.if %2 {
      %cst = arith.constant 0.000000e+00 : f32
      %13 = vector.broadcast %cst : f32 to vector<128x384xf32>
      %c0 = arith.constant 0 : index
      %c0_5 = arith.constant 0 : index
      %14 = vector.load %arg11[%c0, %c0_5] : memref<128x384xf32, #tpu.memory_space<vmem>>, vector<128x384xf32>
      tpu.vector_store %arg11[%c0, %c0_5], %13 {strides = array<i32>} : memref<128x384xf32, #tpu.memory_space<vmem>>, vector<128x384xf32>,
    } else {
    }
    %c1_i32 = arith.constant 1 : i32
    %3 = arith.muli %arg0, %c1_i32 : i32
    %4 = arith.addi %3, %arg1 : i32
    %5 = arith.index_cast %4 : i32 to index
    %6 = memref.load %arg2[%5] : memref<1xi32, #tpu.memory_space<smem>>
    %c0_i32_1 = arith.constant 0 : i32
    %7 = arith.cmpi ne, %6, %c0_i32_1 : i32
    %8 = arith.extui %7 : i1 to i32
    %c0_i32_2 = arith.constant 0 : i32
    %9 = arith.cmpi ne, %8, %c0_i32_2 : i32
    scf.if %9 {
      %c0 = arith.constant 0 : index
      %c0_5 = arith.constant 0 : index
      %13 = vector.load %arg4[%c0, %c0_5] : memref<128x128xbf16, #tpu.memory_space<vmem>>, vector<128x128xbf16>
      %c0_6 = arith.constant 0 : index
      %c0_7 = arith.constant 0 : index
      %c0_8 = arith.constant 0 : index
      %c0_9 = arith.constant 0 : index
      %c0_10 = arith.constant 0 : index
      %14 = vector.load %arg5[%c0_6, %c0_7, %c0_8, %c0_9, %c0_10] : memref<1x1x3x128x128xi8, #tpu.memory_space<vmem>>, vector<1x1x1x128x128xi8>
      %15 = vector.shape_cast %14 : vector<1x1x1x128x128xi8> to vector<128x128xi8>
      %16 = arith.sitofp %15 : vector<128x128xi8> to vector<128x128xbf16>
      %c0_11 = arith.constant 0 : index
      %c0_12 = arith.constant 0 : index
      %17 = vector.load %arg11[%c0_11, %c0_12] : memref<128x384xf32, #tpu.memory_space<vmem>>, vector<128x128xf32>
      %cst = arith.constant dense<0.000000e+00> : vector<128x128xf32>
      %18 = tpu.matmul %16, %13, %cst {dimension_numbers = #tpu.dot_dimension_numbers<[1], [0], [0], [1], [0, 0, 1, 1], [], []>} : vector<128x128xbf16>, vector<128x128xbf16>, vector<128x128xf32> -> vector<128x128xf32>
      %19 = arith.addf %17, %18 : vector<128x128xf32>
      %c0_13 = arith.constant 0 : index
      %c0_14 = arith.constant 0 : index
      %20 = vector.load %arg11[%c0_13, %c0_14] : memref<128x384xf32, #tpu.memory_space<vmem>>, vector<128x128xf32>
      tpu.vector_store %arg11[%c0_13, %c0_14], %19 {strides = array<i32>} : memref<128x384xf32, #tpu.memory_space<vmem>>, vector<128x128xf32>,
      %c0_15 = arith.constant 0 : index
      %c0_16 = arith.constant 0 : index
      %c1 = arith.constant 1 : index
      %c0_17 = arith.constant 0 : index
      %c0_18 = arith.constant 0 : index
      %21 = vector.load %arg5[%c0_15, %c0_16, %c1, %c0_17, %c0_18] : memref<1x1x3x128x128xi8, #tpu.memory_space<vmem>>, vector<1x1x1x128x128xi8>
      %22 = vector.shape_cast %21 : vector<1x1x1x128x128xi8> to vector<128x128xi8>
      %23 = arith.sitofp %22 : vector<128x128xi8> to vector<128x128xbf16>
      %c0_19 = arith.constant 0 : index
      %c128 = arith.constant 128 : index
      %24 = vector.load %arg11[%c0_19, %c128] : memref<128x384xf32, #tpu.memory_space<vmem>>, vector<128x128xf32>
      %cst_20 = arith.constant dense<0.000000e+00> : vector<128x128xf32>
      %25 = tpu.matmul %23, %13, %cst_20 {dimension_numbers = #tpu.dot_dimension_numbers<[1], [0], [0], [1], [0, 0, 1, 1], [], []>} : vector<128x128xbf16>, vector<128x128xbf16>, vector<128x128xf32> -> vector<128x128xf32>
      %26 = arith.addf %24, %25 : vector<128x128xf32>
      %c0_21 = arith.constant 0 : index
      %c128_22 = arith.constant 128 : index
      %27 = vector.load %arg11[%c0_21, %c128_22] : memref<128x384xf32, #tpu.memory_space<vmem>>, vector<128x128xf32>
      tpu.vector_store %arg11[%c0_21, %c128_22], %26 {strides = array<i32>} : memref<128x384xf32, #tpu.memory_space<vmem>>, vector<128x128xf32>,
      %c0_23 = arith.constant 0 : index
      %c0_24 = arith.constant 0 : index
      %c2 = arith.constant 2 : index
      %c0_25 = arith.constant 0 : index
      %c0_26 = arith.constant 0 : index
      %28 = vector.load %arg5[%c0_23, %c0_24, %c2, %c0_25, %c0_26] : memref<1x1x3x128x128xi8, #tpu.memory_space<vmem>>, vector<1x1x1x128x128xi8>
      %29 = vector.shape_cast %28 : vector<1x1x1x128x128xi8> to vector<128x128xi8>
      %30 = arith.sitofp %29 : vector<128x128xi8> to vector<128x128xbf16>
      %c0_27 = arith.constant 0 : index
      %c256 = arith.constant 256 : index
      %31 = vector.load %arg11[%c0_27, %c256] : memref<128x384xf32, #tpu.memory_space<vmem>>, vector<128x128xf32>
      %cst_28 = arith.constant dense<0.000000e+00> : vector<128x128xf32>
      %32 = tpu.matmul %30, %13, %cst_28 {dimension_numbers = #tpu.dot_dimension_numbers<[1], [0], [0], [1], [0, 0, 1, 1], [], []>} : vector<128x128xbf16>, vector<128x128xbf16>, vector<128x128xf32> -> vector<128x128xf32>
      %33 = arith.addf %31, %32 : vector<128x128xf32>
      %c0_29 = arith.constant 0 : index
      %c256_30 = arith.constant 256 : index
      %34 = vector.load %arg11[%c0_29, %c256_30] : memref<128x384xf32, #tpu.memory_space<vmem>>, vector<128x128xf32>
      tpu.vector_store %arg11[%c0_29, %c256_30], %33 {strides = array<i32>} : memref<128x384xf32, #tpu.memory_space<vmem>>, vector<128x128xf32>,
    } else {
    }
    %c0_i32_3 = arith.constant 0 : i32
    %10 = arith.cmpi eq, %arg1, %c0_i32_3 : i32
    %11 = arith.extui %10 : i1 to i32
    %c0_i32_4 = arith.constant 0 : i32
    %12 = arith.cmpi ne, %11, %c0_i32_4 : i32
    scf.if %12 {
      %c0 = arith.constant 0 : index
      %c0_5 = arith.constant 0 : index
      %13 = vector.load %arg11[%c0, %c0_5] : memref<128x384xf32, #tpu.memory_space<vmem>>, vector<128x384xf32>
      %c0_6 = arith.constant 0 : index
      %c0_7 = arith.constant 0 : index
      %14 = vector.load %arg9[%c0_6, %c0_7] : memref<128x384xf32, #tpu.memory_space<vmem>>, vector<128x384xf32>
      %15 = arith.mulf %13, %14 : vector<128x384xf32>
      %16 = arith.truncf %15 : vector<128x384xf32> to vector<128x384xbf16>
      %c0_8 = arith.constant 0 : index
      %c0_9 = arith.constant 0 : index
      %17 = vector.load %arg6[%c0_8, %c0_9] : memref<384x128xbf16, #tpu.memory_space<vmem>>, vector<384x128xbf16>
      %cst = arith.constant dense<0.000000e+00> : vector<128x128xf32>
      %18 = tpu.matmul %16, %17, %cst {dimension_numbers = #tpu.dot_dimension_numbers<[1], [0], [0], [1], [0, 0, 1, 1], [], []>} : vector<128x384xbf16>, vector<384x128xbf16>, vector<128x128xf32> -> vector<128x128xf32>
      %c0_10 = arith.constant 0 : index
      %c0_11 = arith.constant 0 : index
      %19 = vector.load %arg3[%c0_10, %c0_11] : memref<128x128xbf16, #tpu.memory_space<vmem>>, vector<128x128xbf16>
      %c0_12 = arith.constant 0 : index
      %c0_13 = arith.constant 0 : index
      %20 = vector.load %arg7[%c0_12, %c0_13] : memref<128x128xbf16, #tpu.memory_space<vmem>>, vector<128x128xbf16>
      %cst_14 = arith.constant dense<0.000000e+00> : vector<128x128xf32>
      %21 = tpu.matmul %19, %20, %cst_14 {dimension_numbers = #tpu.dot_dimension_numbers<[1], [0], [0], [1], [0, 0, 1, 1], [], []>} : vector<128x128xbf16>, vector<128x128xbf16>, vector<128x128xf32> -> vector<128x128xf32>
      %22 = arith.addf %18, %21 : vector<128x128xf32>
      %c0_15 = arith.constant 0 : index
      %c0_16 = arith.constant 0 : index
      %23 = vector.load %arg8[%c0_15, %c0_16] : memref<1x128xf32, #tpu.memory_space<vmem>>, vector<1x128xf32>
      %24 = vector.broadcast %23 : vector<1x128xf32> to vector<128x128xf32>
      %25 = arith.addf %22, %24 : vector<128x128xf32>
      %c0_17 = arith.constant 0 : index
      %c0_18 = arith.constant 0 : index
      %26 = vector.load %arg10[%c0_17, %c0_18] : memref<128x128xf32, #tpu.memory_space<vmem>>, vector<128x128xf32>
      tpu.vector_store %arg10[%c0_17, %c0_18], %25 {strides = array<i32>} : memref<128x128xf32, #tpu.memory_space<vmem>>, vector<128x128xf32>,
    } else {
    }
    return
  }
  func.func @transform_0(%arg0: i32, %arg1: i32, %arg2: memref<1xi32, #tpu.memory_space<smem>>) -> (i32, i32) {
    %c0_i32 = arith.constant 0 : i32
    %c0_i32_0 = arith.constant 0 : i32
    return %arg0, %c0_i32 : i32, i32
  }
  func.func @transform_1(%arg0: i32, %arg1: i32, %arg2: memref<1xi32, #tpu.memory_space<smem>>) -> (i32, i32) {
    %c0_i32 = arith.constant 0 : i32
    %c0_i32_0 = arith.constant 0 : i32
    return %arg1, %c0_i32 : i32, i32
  }
  func.func @transform_2(%arg0: i32, %arg1: i32, %arg2: memref<1xi32, #tpu.memory_space<smem>>) -> (i32, i32, i32, i32, i32) {
    %c0_i32 = arith.constant 0 : i32
    %c0_i32_0 = arith.constant 0 : i32
    %c0_i32_1 = arith.constant 0 : i32
    %c0_i32_2 = arith.constant 0 : i32
    return %arg0, %arg1, %c0_i32, %c0_i32_0, %c0_i32_1 : i32, i32, i32, i32, i32
  }
  func.func @transform_3(%arg0: i32, %arg1: i32, %arg2: memref<1xi32, #tpu.memory_space<smem>>) -> (i32, i32) {
    %c0_i32 = arith.constant 0 : i32
    %c0_i32_0 = arith.constant 0 : i32
    %c0_i32_1 = arith.constant 0 : i32
    return %c0_i32, %c0_i32_0 : i32, i32
  }
  func.func @transform_4(%arg0: i32, %arg1: i32, %arg2: memref<1xi32, #tpu.memory_space<smem>>) -> (i32, i32) {
    %c0_i32 = arith.constant 0 : i32
    %c0_i32_0 = arith.constant 0 : i32
    %c0_i32_1 = arith.constant 0 : i32
    return %c0_i32, %c0_i32_0 : i32, i32
  }
  func.func @transform_5(%arg0: i32, %arg1: i32, %arg2: memref<1xi32, #tpu.memory_space<smem>>) -> (i32, i32) {
    %c0_i32 = arith.constant 0 : i32
    %c0_i32_0 = arith.constant 0 : i32
    %c0_i32_1 = arith.constant 0 : i32
    return %c0_i32, %c0_i32_0 : i32, i32
  }
  func.func @transform_6(%arg0: i32, %arg1: i32, %arg2: memref<1xi32, #tpu.memory_space<smem>>) -> (i32, i32) {
    %c0_i32 = arith.constant 0 : i32
    %c0_i32_0 = arith.constant 0 : i32
    return %arg0, %c0_i32 : i32, i32
  }
  func.func @transform_7(%arg0: i32, %arg1: i32, %arg2: memref<1xi32, #tpu.memory_space<smem>>) -> (i32, i32) {
    %c0_i32 = arith.constant 0 : i32
    %c0_i32_0 = arith.constant 0 : i32
    return %arg0, %c0_i32 : i32, i32
  }
}

</mosaic_0001>

<llo_original>
// kernel: rgcn_conv_pallas.1
$region0: #{rgcn_conv_pallas.1}
  #allocation0 [shape = 'u32[]', space=smem, size = 0x4, offset = 0x4, fixed_abs, tag = 'smem constant byte address 0x4 - core index']
  #allocation1 [shape = 'u32[144,128]{1,0:T(1,128)}', space=vmem, size = 0x12000, scoped, tag = 'internal scratch']
  #allocation2 [shape = 'f32[128,384]{1,0:T(8,128)}', space=vmem, size = 0x30000, scoped, tag = 'scratch operand']
  #allocation3 [shape = 's32[1]{0}', space=sflag, size = 0x4, scoped, tag = 'scoped memory for rgcn_conv_pallas.1']
  #allocation4 [shape = 's32[1]{0:T(128)S(6)}', space=smem, size = 0x200, scoped, tag = 'prefetched SMEM operand 0']
  %s0 = inlined_call_operand.<no memory space> [shape: s32[1], index: 0, kind: input, shape index: {}]
  %s1 = inlined_call_operand.vmem [shape: bf16[128,128], index: 1, kind: input, shape index: {}, may-alias: {1,2}]
  %s2 = inlined_call_operand.vmem [shape: bf16[128,128], index: 2, kind: input, shape index: {}, may-alias: {1,2}]
  %s3 = inlined_call_operand.vmem [shape: s8[1,1,3,128,128], index: 3, kind: input, shape index: {}]
  %s4 = inlined_call_operand.hbm [shape: bf16[384,128], index: 4, kind: input, shape index: {}]
  %s5 = inlined_call_operand.hbm [shape: bf16[128,128], index: 5, kind: input, shape index: {}]
  %s6 = inlined_call_operand.vmem [shape: f32[1,128], index: 6, kind: input, shape index: {}]
  %s7 = inlined_call_operand.hbm [shape: f32[128,384], index: 7, kind: input, shape index: {}]
  %s8 = inlined_call_operand.vmem [shape: f32[128,128], index: 8, kind: output, shape index: {}]
  %s9 = sld [smem:[#allocation0]]
  $region62: #{rgcn_conv_pallas.1} parent=0
    _
  %s11 = ssub.s32 1, %s9
  %s12 = scalar_select 0, %s11, %s9
  %13 = sst [smem:[#allocation4]] %s0
  $region1: #{rgcn_conv_pallas.1} parent=0
    #allocation5 [shape = 'u8[98304]{0}', space=vmem, size = 0x18000, scoped, tag = 'input window, operand 4, single buffered']
    #allocation6 [shape = 's32[1]{0}', space=sflag, size = 0x4, scoped, tag = 'scoped memory for rgcn_conv_pallas.1']
    #allocation7 [shape = 'u8[32768]{0}', space=vmem, size = 0x8000, scoped, tag = 'input window, operand 5, single buffered']
    #allocation8 [shape = 's32[1]{0}', space=sflag, size = 0x4, scoped, tag = 'scoped memory for rgcn_conv_pallas.1']
    #allocation9 [shape = 'u8[196608]{0}', space=vmem, size = 0x30000, scoped, tag = 'input window, operand 7, single buffered']
    %14 = vsyncpa [#allocation6], 0
    %15 = vsyncpa [#allocation8], 0
    // Predicated region
    $region2: #{rgcn_conv_pallas.1} parent=1 // pred_check
      _
    $region3: #{rgcn_conv_pallas.1} parent=1 // pred_check_branch
      %17 = sbr.rel (0) target = $region5
    $region4: #{rgcn_conv_pallas.1} parent=1 // pred_region
      _
    $region5: #{rgcn_conv_pallas.1} parent=1 // pred_fallthru
      _
    // Predicated region
    $region6: #{rgcn_conv_pallas.1} parent=1 // pred_check
      _
    $region7: #{rgcn_conv_pallas.1} parent=1 // pred_check_branch
      %19 = sbr.rel (0) target = $region9
    $region8: #{rgcn_conv_pallas.1} parent=1 // pred_region
      _
    $region9: #{rgcn_conv_pallas.1} parent=1 // pred_fallthru
      _
    // Predicated region
    $region10: #{rgcn_conv_pallas.1} parent=1 // pred_check
      _
    $region11: #{rgcn_conv_pallas.1} parent=1 // pred_check_branch
      %21 = sbr.rel (0) target = $region13
    $region12: #{rgcn_conv_pallas.1} parent=1 // pred_region
      _
    $region13: #{rgcn_conv_pallas.1} parent=1 // pred_fallthru
      _
    // Predicated region
    $region14: #{rgcn_conv_pallas.1} parent=1 // pred_check
      _
    $region15: #{rgcn_conv_pallas.1} parent=1 // pred_check_branch
      %23 = sbr.rel (0) target = $region17
    $region16: #{rgcn_conv_pallas.1} parent=1 // pred_region
      %s25 = ssub.s32 3072, 3072
      %26 = vsyncadd [#allocation6], %s25
      %s27 = sshll.u32 [#allocation5], 4
      %s28 = int_to_ptr.vmem [resolvable:$true] %s27
      %33 = dma.hbm_to_vmem [thread:$0]  %s4, 3072, %s28, [#allocation6], 64, 64, 4
    $region17: #{rgcn_conv_pallas.1} parent=1 // pred_fallthru
      _
    // Predicated region
    $region18: #{rgcn_conv_pallas.1} parent=1 // pred_check
      _
    $region19: #{rgcn_conv_pallas.1} parent=1 // pred_check_branch
      %35 = sbr.rel (0) target = $region21
    $region20: #{rgcn_conv_pallas.1} parent=1 // pred_region
      %s37 = ssub.s32 1024, 1024
      %38 = vsyncadd [#allocation8], %s37
      %s39 = sshll.u32 [#allocation7], 4
      %s40 = int_to_ptr.vmem [resolvable:$true] %s39
      %45 = dma.hbm_to_vmem [thread:$0]  %s5, 1024, %s40, [#allocation8], 64, 64, 4
    $region21: #{rgcn_conv_pallas.1} parent=1 // pred_fallthru
      _
    // Predicated region
    $region22: #{rgcn_conv_pallas.1} parent=1 // pred_check
      _
    $region23: #{rgcn_conv_pallas.1} parent=1 // pred_check_branch
      %47 = sbr.rel (0) target = $region25
    $region24: #{rgcn_conv_pallas.1} parent=1 // pred_region
      _
    $region25: #{rgcn_conv_pallas.1} parent=1 // pred_fallthru
      _
    // Predicated region
    $region26: #{rgcn_conv_pallas.1} parent=1 // pred_check
      _
    $region27: #{rgcn_conv_pallas.1} parent=1 // pred_check_branch
      %49 = sbr.rel (0) target = $region29
    $region28: #{rgcn_conv_pallas.1} parent=1 // pred_region
      %s51 = ssub.s32 6144, 6144
      %52 = vsyncadd [#allocation8], %s51
      %s53 = sshll.u32 [#allocation9], 4
      %s54 = int_to_ptr.vmem [resolvable:$true] %s53
      %59 = dma.hbm_to_vmem [thread:$0]  %s7, 6144, %s54, [#allocation8], 384, 384, 24
    $region29: #{rgcn_conv_pallas.1} parent=1 // pred_fallthru
      _
    // Predicated region
    $region30: #{rgcn_conv_pallas.1} parent=1 // pred_check
      _
    $region31: #{rgcn_conv_pallas.1} parent=1 // pred_check_branch
      %61 = sbr.rel (0) target = $region33
    $region32: #{rgcn_conv_pallas.1} parent=1 // pred_region
      %62 = dma.done [#allocation6], 3072
    $region33: #{rgcn_conv_pallas.1} parent=1 // pred_fallthru
      _
    // Predicated region
    $region34: #{rgcn_conv_pallas.1} parent=1 // pred_check
      _
    $region35: #{rgcn_conv_pallas.1} parent=1 // pred_check_branch
      %64 = sbr.rel (0) target = $region37
    $region36: #{rgcn_conv_pallas.1} parent=1 // pred_region
      %65 = dma.done [#allocation8], 1024
    $region37: #{rgcn_conv_pallas.1} parent=1 // pred_fallthru
      _
    // Predicated region
    $region38: #{rgcn_conv_pallas.1} parent=1 // pred_check
      _
    $region39: #{rgcn_conv_pallas.1} parent=1 // pred_check_branch
      %67 = sbr.rel (0) target = $region41
    $region40: #{rgcn_conv_pallas.1} parent=1 // pred_region
      %68 = dma.done [#allocation8], 6144
    $region41: #{rgcn_conv_pallas.1} parent=1 // pred_fallthru
      _
    %p70 = scmp.eq.s32.totalorder 0, 0
    // Predicated region
    $region42: #{rgcn_conv_pallas.1} parent=1 // pred_check
      %p71 = pneg %p70
    $region43: #{rgcn_conv_pallas.1} parent=1 // pred_check_branch
      %73 = sbr.rel (%p71) target = $region45
    $region44: #{rgcn_conv_pallas.1} parent=1 // pred_region
      %74 = vst [vmem:[#allocation2] sm:$0xff] 0.0
      %75 = vst [vmem:[#allocation2 + $0x8] sm:$0xff] 0.0
      %76 = vst [vmem:[#allocation2 + $0x10] sm:$0xff] 0.0
      %77 = vst [vmem:[#allocation2 + $0x18] sm:$0xff] 0.0
      %78 = vst [vmem:[#allocation2 + $0x20] sm:$0xff] 0.0
      %79 = vst [vmem:[#allocation2 + $0x28] sm:$0xff] 0.0
      %80 = vst [vmem:[#allocation2 + $0x30] sm:$0xff] 0.0
      %81 = vst [vmem:[#allocation2 + $0x38] sm:$0xff] 0.0
      %82 = vst [vmem:[#allocation2 + $0x40] sm:$0xff] 0.0
      %83 = vst [vmem:[#allocation2 + $0x48] sm:$0xff] 0.0
      %84 = vst [vmem:[#allocation2 + $0x50] sm:$0xff] 0.0
      %85 = vst [vmem:[#allocation2 + $0x58] sm:$0xff] 0.0
      %86 = vst [vmem:[#allocation2 + $0x60] sm:$0xff] 0.0
      %87 = vst [vmem:[#allocation2 + $0x68] sm:$0xff] 0.0
      %88 = vst [vmem:[#allocation2 + $0x70] sm:$0xff] 0.0
      %89 = vst [vmem:[#allocation2 + $0x78] sm:$0xff] 0.0
      %90 = vst [vmem:[#allocation2 + $0x80] sm:$0xff] 0.0
      %91 = vst [vmem:[#allocation2 + $0x88] sm:$0xff] 0.0
      %92 = vst [vmem:[#allocation2 + $0x90] sm:$0xff] 0.0
      %93 = vst [vmem:[#allocation2 + $0x98] sm:$0xff] 0.0
      %94 = vst [vmem:[#allocation2 + $0xa0] sm:$0xff] 0.0
      %95 = vst [vmem:[#allocation2 + $0xa8] sm:$0xff] 0.0
      %96 = vst [vmem:[#allocation2 + $0xb0] sm:$0xff] 0.0
      %97 = vst [vmem:[#allocation2 + $0xb8] sm:$0xff] 0.0
      %98 = vst [vmem:[#allocation2 + $0xc0] sm:$0xff] 0.0
      %99 = vst [vmem:[#allocation2 + $0xc8] sm:$0xff] 0.0
      %100 = vst [vmem:[#allocation2 + $0xd0] sm:$0xff] 0.0
      %101 = vst [vmem:[#allocation2 + $0xd8] sm:$0xff] 0.0
      %102 = vst [vmem:[#allocation2 + $0xe0] sm:$0xff] 0.0
      %103 = vst [vmem:[#allocation2 + $0xe8] sm:$0xff] 0.0
      %104 = vst [vmem:[#allocation2 + $0xf0] sm:$0xff] 0.0
      %105 = vst [vmem:[#allocation2 + $0xf8] sm:$0xff] 0.0
      %106 = vst [vmem:[#allocation2 + $0x100] sm:$0xff] 0.0
      %107 = vst [vmem:[#allocation2 + $0x108] sm:$0xff] 0.0
      %108 = vst [vmem:[#allocation2 + $0x110] sm:$0xff] 0.0
      %109 = vst [vmem:[#allocation2 + $0x118] sm:$0xff] 0.0
      %110 = vst [vmem:[#allocation2 + $0x120] sm:$0xff] 0.0
      %111 = vst [vmem:[#allocation2 + $0x128] sm:$0xff] 0.0
      %112 = vst [vmem:[#allocation2 + $0x130] sm:$0xff] 0.0
      %113 = vst [vmem:[#allocation2 + $0x138] sm:$0xff] 0.0
      %114 = vst [vmem:[#allocation2 + $0x140] sm:$0xff] 0.0
      %115 = vst [vmem:[#allocation2 + $0x148] sm:$0xff] 0.0
      %116 = vst [vmem:[#allocation2 + $0x150] sm:$0xff] 0.0
      %117 = vst [vmem:[#allocation2 + $0x158] sm:$0xff] 0.0
      %118 = vst [vmem:[#allocation2 + $0x160] sm:$0xff] 0.0
      %119 = vst [vmem:[#allocation2 + $0x168] sm:$0xff] 0.0
      %120 = vst [vmem:[#allocation2 + $0x170] sm:$0xff] 0.0
      %121 = vst [vmem:[#allocation2 + $0x178] sm:$0xff] 0.0
    $region45: #{rgcn_conv_pallas.1} parent=1 // pred_fallthru
      _
    %s122 = sadd.s32 0, 0
    %s123 = sld [smem:[#allocation4 + %s122]]
    %p124 = scmp.ne.s32.totalorder %s123, 0
    // Predicated region
    $region46: #{rgcn_conv_pallas.1} parent=1 // pred_check
      %p125 = pneg %p124
    $region47: #{rgcn_conv_pallas.1} parent=1 // pred_check_branch
      %127 = sbr.rel (%p125) target = $region49
    $region48: #{rgcn_conv_pallas.1} parent=1 // pred_region
      %v128 = vld [vmem:[%s2] sm:$0xf]
      %v129 = vld [vmem:[%s2 + $0x4] sm:$0xf]
      %v130 = vld [vmem:[%s2 + $0x8] sm:$0xf]
      %v131 = vld [vmem:[%s2 + $0xc] sm:$0xf]
      %v132 = vld [vmem:[%s2 + $0x10] sm:$0xf]
      %v133 = vld [vmem:[%s2 + $0x14] sm:$0xf]
      %v134 = vld [vmem:[%s2 + $0x18] sm:$0xf]
      %v135 = vld [vmem:[%s2 + $0x1c] sm:$0xf]
      %v136 = vld [vmem:[%s2 + $0x20] sm:$0xf]
      %v137 = vld [vmem:[%s2 + $0x24] sm:$0xf]
      %v138 = vld [vmem:[%s2 + $0x28] sm:$0xf]
      %v139 = vld [vmem:[%s2 + $0x2c] sm:$0xf]
      %v140 = vld [vmem:[%s2 + $0x30] sm:$0xf]
      %v141 = vld [vmem:[%s2 + $0x34] sm:$0xf]
      %v142 = vld [vmem:[%s2 + $0x38] sm:$0xf]
      %v143 = vld [vmem:[%s2 + $0x3c] sm:$0xf]
      %v144 = vld [vmem:[%s3] sm:$0xff]
      %v145 = vld [vmem:[%s3 + $0x8] sm:$0xff]
      %v146 = vld [vmem:[%s3 + $0x10] sm:$0xff]
      %v147 = vld [vmem:[%s3 + $0x18] sm:$0xff]
      %v148 = vunpack.c.l.s8.bf16 %v144
      %v149 = vunpack.c.h.s8.bf16 %v144
      %v150 = vunpack.c.l.s8.bf16 %v145
      %v151 = vunpack.c.h.s8.bf16 %v145
      %v152 = vunpack.c.l.s8.bf16 %v146
      %v153 = vunpack.c.h.s8.bf16 %v146
      %v154 = vunpack.c.l.s8.bf16 %v147
      %v155 = vunpack.c.h.s8.bf16 %v147
      %v156 = vld [vmem:[#allocation2] sm:$0xff]
      %v157 = vld [vmem:[#allocation2 + $0x18] sm:$0xff]
      %v158 = vld [vmem:[#allocation2 + $0x30] sm:$0xff]
      %v159 = vld [vmem:[#allocation2 + $0x48] sm:$0xff]
      %v160 = vld [vmem:[#allocation2 + $0x60] sm:$0xff]
      %v161 = vld [vmem:[#allocation2 + $0x78] sm:$0xff]
      %v162 = vld [vmem:[#allocation2 + $0x90] sm:$0xff]
      %v163 = vld [vmem:[#allocation2 + $0xa8] sm:$0xff]
      %v164 = vld [vmem:[#allocation2 + $0xc0] sm:$0xff]
      %v165 = vld [vmem:[#allocation2 + $0xd8] sm:$0xff]
      %v166 = vld [vmem:[#allocation2 + $0xf0] sm:$0xff]
      %v167 = vld [vmem:[#allocation2 + $0x108] sm:$0xff]
      %v168 = vld [vmem:[#allocation2 + $0x120] sm:$0xff]
      %v169 = vld [vmem:[#allocation2 + $0x138] sm:$0xff]
      %v170 = vld [vmem:[#allocation2 + $0x150] sm:$0xff]
      %v171 = vld [vmem:[#allocation2 + $0x168] sm:$0xff]
      %v188 = vunpack.c.l.b16 %v128
      %v189 = vunpack.c.l.b16 %v129
      %v190 = vunpack.c.l.b16 %v130
      %v191 = vunpack.c.l.b16 %v131
      %v192 = vunpack.c.l.b16 %v132
      %v193 = vunpack.c.l.b16 %v133
      %v194 = vunpack.c.l.b16 %v134
      %v195 = vunpack.c.l.b16 %v135
      %v196 = vunpack.c.l.b16 %v136
      %v197 = vunpack.c.l.b16 %v137
      %v198 = vunpack.c.l.b16 %v138
      %v199 = vunpack.c.l.b16 %v139
      %v200 = vunpack.c.l.b16 %v140
      %v201 = vunpack.c.l.b16 %v141
      %v202 = vunpack.c.l.b16 %v142
      %v203 = vunpack.c.l.b16 %v143
      %v204 = vpack.c.b16 %v189, %v188
      %v205 = vpack.c.b16 %v191, %v190
      %v206 = vpack.c.b16 %v193, %v192
      %v207 = vpack.c.b16 %v195, %v194
      %v208 = vpack.c.b16 %v197, %v196
      %v209 = vpack.c.b16 %v199, %v198
      %v210 = vpack.c.b16 %v201, %v200
      %v211 = vpack.c.b16 %v203, %v202
      %220 = vmatprep.subr.bf16.mxu0 0
      %221 = vmatpush1.bf16.msra.mxu0 %v204
      %222 = vmatprep.subr.bf16.mxu0 0
      %223 = vmatpush1.bf16.msra.mxu0 %v205
      %224 = vmatprep.subr.bf16.mxu0 0
      %225 = vmatpush1.bf16.msra.mxu0 %v206
      %226 = vmatprep.subr.bf16.mxu0 0
      %227 = vmatpush1.bf16.msra.mxu0 %v207
      %228 = vmatprep.subr.bf16.mxu0 0
      %229 = vmatpush1.bf16.msra.mxu0 %v208
      %230 = vmatprep.subr.bf16.mxu0 0
      %231 = vmatpush1.bf16.msra.mxu0 %v209
      %232 = vmatprep.subr.bf16.mxu0 0
      %233 = vmatpush1.bf16.msra.mxu0 %v210
      %234 = vmatprep.subr.bf16.mxu0 0
      %235 = vmatpush1.bf16.msra.mxu0 %v211
      %236 = vmatprep.subr.bf16.mxu0 0
      %237 = vmatpush1.bf16.msra.mxu0 0
      %238 = vmatprep.subr.bf16.mxu0 0
      %239 = vmatpush1.bf16.msra.mxu0 0
      %240 = vmatprep.subr.bf16.mxu0 0
      %241 = vmatpush1.bf16.msra.mxu0 0
      %242 = vmatprep.subr.bf16.mxu0 0
      %243 = vmatpush1.bf16.msra.mxu0 0
      %244 = vmatprep.subr.bf16.mxu0 0
      %245 = vmatpush1.bf16.msra.mxu0 0
      %246 = vmatprep.subr.bf16.mxu0 0
      %247 = vmatpush1.bf16.msra.mxu0 0
      %248 = vmatprep.subr.bf16.mxu0 0
      %249 = vmatpush1.bf16.msra.mxu0 0
      %250 = vmatprep.subr.bf16.mxu0 0
      %251 = vmatpush1.bf16.msra.mxu0 0
      %252 = vmatprep.mubr.bf16.mxu0 0
      %253 = vmatmul.mubr.bf16.gmra.mrb[0].mxu0 %v148
      %v254 = vpop.f32.mrb[0].mxu0
      %v255 = vadd.f32 0.0, %v254
      %v256 = vpop.f32.mrb[0].mxu0
      %v257 = vpop.f32.mrb[0].mxu0
      %v258 = vadd.f32 0.0, %v257
      %v259 = vpop.f32.mrb[0].mxu0
      %260 = vmatprep.mubr.bf16.mxu0 0
      %261 = vmatmul.mubr.bf16.gmra.mrb[0].mxu0 %v149
      %v262 = vpop.f32.mrb[0].mxu0
      %v263 = vadd.f32 0.0, %v262
      %v264 = vpop.f32.mrb[0].mxu0
      %v265 = vpop.f32.mrb[0].mxu0
      %v266 = vadd.f32 0.0, %v265
      %v267 = vpop.f32.mrb[0].mxu0
      %268 = vmatprep.mubr.bf16.mxu0 0
      %269 = vmatmul.mubr.bf16.gmra.mrb[0].mxu0 %v150
      %v270 = vpop.f32.mrb[0].mxu0
      %v271 = vadd.f32 0.0, %v270
      %v272 = vpop.f32.mrb[0].mxu0
      %v273 = vpop.f32.mrb[0].mxu0
      %v274 = vadd.f32 0.0, %v273
      %v275 = vpop.f32.mrb[0].mxu0
      %276 = vmatprep.mubr.bf16.mxu0 0
      %277 = vmatmul.mubr.bf16.gmra.mrb[0].mxu0 %v151
      %v278 = vpop.f32.mrb[0].mxu0
      %v279 = vadd.f32 0.0, %v278
      %v280 = vpop.f32.mrb[0].mxu0
      %v281 = vpop.f32.mrb[0].mxu0
      %v282 = vadd.f32 0.0, %v281
      %v283 = vpop.f32.mrb[0].mxu0
      %284 = vmatprep.mubr.bf16.mxu0 0
      %285 = vmatmul.mubr.bf16.gmra.mrb[0].mxu0 %v152
      %v286 = vpop.f32.mrb[0].mxu0
      %v287 = vadd.f32 0.0, %v286
      %v288 = vpop.f32.mrb[0].mxu0
      %v289 = vpop.f32.mrb[0].mxu0
      %v290 = vadd.f32 0.0, %v289
      %v291 = vpop.f32.mrb[0].mxu0
      %292 = vmatprep.mubr.bf16.mxu0 0
      %293 = vmatmul.mubr.bf16.gmra.mrb[0].mxu0 %v153
      %v294 = vpop.f32.mrb[0].mxu0
      %v295 = vadd.f32 0.0, %v294
      %v296 = vpop.f32.mrb[0].mxu0
      %v297 = vpop.f32.mrb[0].mxu0
      %v298 = vadd.f32 0.0, %v297
      %v299 = vpop.f32.mrb[0].mxu0
      %300 = vmatprep.mubr.bf16.mxu0 0
      %301 = vmatmul.mubr.bf16.gmra.mrb[0].mxu0 %v154
      %v302 = vpop.f32.mrb[0].mxu0
      %v303 = vadd.f32 0.0, %v302
      %v304 = vpop.f32.mrb[0].mxu0
      %v305 = vpop.f32.mrb[0].mxu0
      %v306 = vadd.f32 0.0, %v305
      %v307 = vpop.f32.mrb[0].mxu0
      %308 = vmatprep.mubr.bf16.mxu0 0
      %309 = vmatmul.mubr.bf16.gmra.mrb[0].mxu0 %v155
      %v310 = vpop.f32.mrb[0].mxu0
      %v311 = vadd.f32 0.0, %v310
      %v312 = vpop.f32.mrb[0].mxu0
      %v313 = vpop.f32.mrb[0].mxu0
      %v314 = vadd.f32 0.0, %v313
      %v315 = vpop.f32.mrb[0].mxu0
      %316 = vdwg.mxu0
      %v317 = vadd.f32 %v156, %v255
      %v318 = vadd.f32 %v157, %v258
      %v319 = vadd.f32 %v158, %v263
      %v320 = vadd.f32 %v159, %v266
      %v321 = vadd.f32 %v160, %v271
      %v322 = vadd.f32 %v161, %v274
      %v323 = vadd.f32 %v162, %v279
      %v324 = vadd.f32 %v163, %v282
      %v325 = vadd.f32 %v164, %v287
      %v326 = vadd.f32 %v165, %v290
      %v327 = vadd.f32 %v166, %v295
      %v328 = vadd.f32 %v167, %v298
      %v329 = vadd.f32 %v168, %v303
      %v330 = vadd.f32 %v169, %v306
      %v331 = vadd.f32 %v170, %v311
      %v332 = vadd.f32 %v171, %v314
      %333 = vst [vmem:[#allocation2] sm:$0xff] %v317
      %334 = vst [vmem:[#allocation2 + $0x18] sm:$0xff] %v318
      %335 = vst [vmem:[#allocation2 + $0x30] sm:$0xff] %v319
      %336 = vst [vmem:[#allocation2 + $0x48] sm:$0xff] %v320
      %337 = vst [vmem:[#allocation2 + $0x60] sm:$0xff] %v321
      %338 = vst [vmem:[#allocation2 + $0x78] sm:$0xff] %v322
      %339 = vst [vmem:[#allocation2 + $0x90] sm:$0xff] %v323
      %340 = vst [vmem:[#allocation2 + $0xa8] sm:$0xff] %v324
      %341 = vst [vmem:[#allocation2 + $0xc0] sm:$0xff] %v325
      %342 = vst [vmem:[#allocation2 + $0xd8] sm:$0xff] %v326
      %343 = vst [vmem:[#allocation2 + $0xf0] sm:$0xff] %v327
      %344 = vst [vmem:[#allocation2 + $0x108] sm:$0xff] %v328
      %345 = vst [vmem:[#allocation2 + $0x120] sm:$0xff] %v329
      %346 = vst [vmem:[#allocation2 + $0x138] sm:$0xff] %v330
      %347 = vst [vmem:[#allocation2 + $0x150] sm:$0xff] %v331
      %348 = vst [vmem:[#allocation2 + $0x168] sm:$0xff] %v332
      %s349 = scalar_lea.vmem %s3, 32
      %v350 = vld [vmem:[%s349] sm:$0xff]
      %v351 = vld [vmem:[%s349 + $0x8] sm:$0xff]
      %v352 = vld [vmem:[%s349 + $0x10] sm:$0xff]
      %v353 = vld [vmem:[%s349 + $0x18] sm:$0xff]
      %v354 = vunpack.c.l.s8.bf16 %v350
      %v355 = vunpack.c.h.s8.bf16 %v350
      %v356 = vunpack.c.l.s8.bf16 %v351
      %v357 = vunpack.c.h.s8.bf16 %v351
      %v358 = vunpack.c.l.s8.bf16 %v352
      %v359 = vunpack.c.h.s8.bf16 %v352
      %v360 = vunpack.c.l.s8.bf16 %v353
      %v361 = vunpack.c.h.s8.bf16 %v353
      %v362 = vld [vmem:[#allocation2 + $0x8] sm:$0xff]
      %v363 = vld [vmem:[#allocation2 + $0x20] sm:$0xff]
      %v364 = vld [vmem:[#allocation2 + $0x38] sm:$0xff]
      %v365 = vld [vmem:[#allocation2 + $0x50] sm:$0xff]
      %v366 = vld [vmem:[#allocation2 + $0x68] sm:$0xff]
      %v367 = vld [vmem:[#allocation2 + $0x80] sm:$0xff]
      %v368 = vld [vmem:[#allocation2 + $0x98] sm:$0xff]
      %v369 = vld [vmem:[#allocation2 + $0xb0] sm:$0xff]
      %v370 = vld [vmem:[#allocation2 + $0xc8] sm:$0xff]
      %v371 = vld [vmem:[#allocation2 + $0xe0] sm:$0xff]
      %v372 = vld [vmem:[#allocation2 + $0xf8] sm:$0xff]
      %v373 = vld [vmem:[#allocation2 + $0x110] sm:$0xff]
      %v374 = vld [vmem:[#allocation2 + $0x128] sm:$0xff]
      %v375 = vld [vmem:[#allocation2 + $0x140] sm:$0xff]
      %v376 = vld [vmem:[#allocation2 + $0x158] sm:$0xff]
      %v377 = vld [vmem:[#allocation2 + $0x170] sm:$0xff]
      %378 = vmatprep.subr.bf16.mxu0 0
      %379 = vmatpush1.bf16.msra.mxu0 %v204
      %380 = vmatprep.subr.bf16.mxu0 0
      %381 = vmatpush1.bf16.msra.mxu0 %v205
      %382 = vmatprep.subr.bf16.mxu0 0
      %383 = vmatpush1.bf16.msra.mxu0 %v206
      %384 = vmatprep.subr.bf16.mxu0 0
      %385 = vmatpush1.bf16.msra.mxu0 %v207
      %386 = vmatprep.subr.bf16.mxu0 0
      %387 = vmatpush1.bf16.msra.mxu0 %v208
      %388 = vmatprep.subr.bf16.mxu0 0
      %389 = vmatpush1.bf16.msra.mxu0 %v209
      %390 = vmatprep.subr.bf16.mxu0 0
      %391 = vmatpush1.bf16.msra.mxu0 %v210
      %392 = vmatprep.subr.bf16.mxu0 0
      %393 = vmatpush1.bf16.msra.mxu0 %v211
      %394 = vmatprep.subr.bf16.mxu0 0
      %395 = vmatpush1.bf16.msra.mxu0 0
      %396 = vmatprep.subr.bf16.mxu0 0
      %397 = vmatpush1.bf16.msra.mxu0 0
      %398 = vmatprep.subr.bf16.mxu0 0
      %399 = vmatpush1.bf16.msra.mxu0 0
      %400 = vmatprep.subr.bf16.mxu0 0
      %401 = vmatpush1.bf16.msra.mxu0 0
      %402 = vmatprep.subr.bf16.mxu0 0
      %403 = vmatpush1.bf16.msra.mxu0 0
      %404 = vmatprep.subr.bf16.mxu0 0
      %405 = vmatpush1.bf16.msra.mxu0 0
      %406 = vmatprep.subr.bf16.mxu0 0
      %407 = vmatpush1.bf16.msra.mxu0 0
      %408 = vmatprep.subr.bf16.mxu0 0
      %409 = vmatpush1.bf16.msra.mxu0 0
      %410 = vmatprep.mubr.bf16.mxu0 0
      %411 = vmatmul.mubr.bf16.gmra.mrb[0].mxu0 %v354
      %v412 = vpop.f32.mrb[0].mxu0
      %v413 = vadd.f32 0.0, %v412
      %v414 = vpop.f32.mrb[0].mxu0
      %v415 = vpop.f32.mrb[0].mxu0
      %v416 = vadd.f32 0.0, %v415
      %v417 = vpop.f32.mrb[0].mxu0
      %418 = vmatprep.mubr.bf16.mxu0 0
      %419 = vmatmul.mubr.bf16.gmra.mrb[0].mxu0 %v355
      %v420 = vpop.f32.mrb[0].mxu0
      %v421 = vadd.f32 0.0, %v420
      %v422 = vpop.f32.mrb[0].mxu0
      %v423 = vpop.f32.mrb[0].mxu0
      %v424 = vadd.f32 0.0, %v423
      %v425 = vpop.f32.mrb[0].mxu0
      %426 = vmatprep.mubr.bf16.mxu0 0
      %427 = vmatmul.mubr.bf16.gmra.mrb[0].mxu0 %v356
      %v428 = vpop.f32.mrb[0].mxu0
      %v429 = vadd.f32 0.0, %v428
      %v430 = vpop.f32.mrb[0].mxu0
      %v431 = vpop.f32.mrb[0].mxu0
      %v432 = vadd.f32 0.0, %v431
      %v433 = vpop.f32.mrb[0].mxu0
      %434 = vmatprep.mubr.bf16.mxu0 0
      %435 = vmatmul.mubr.bf16.gmra.mrb[0].mxu0 %v357
      %v436 = vpop.f32.mrb[0].mxu0
      %v437 = vadd.f32 0.0, %v436
      %v438 = vpop.f32.mrb[0].mxu0
      %v439 = vpop.f32.mrb[0].mxu0
      %v440 = vadd.f32 0.0, %v439
      %v441 = vpop.f32.mrb[0].mxu0
      %442 = vmatprep.mubr.bf16.mxu0 0
      %443 = vmatmul.mubr.bf16.gmra.mrb[0].mxu0 %v358
      %v444 = vpop.f32.mrb[0].mxu0
      %v445 = vadd.f32 0.0, %v444
      %v446 = vpop.f32.mrb[0].mxu0
      %v447 = vpop.f32.mrb[0].mxu0
      %v448 = vadd.f32 0.0, %v447
      %v449 = vpop.f32.mrb[0].mxu0
      %450 = vmatprep.mubr.bf16.mxu0 0
      %451 = vmatmul.mubr.bf16.gmra.mrb[0].mxu0 %v359
      %v452 = vpop.f32.mrb[0].mxu0
      %v453 = vadd.f32 0.0, %v452
      %v454 = vpop.f32.mrb[0].mxu0
      %v455 = vpop.f32.mrb[0].mxu0
      %v456 = vadd.f32 0.0, %v455
      %v457 = vpop.f32.mrb[0].mxu0
      %458 = vmatprep.mubr.bf16.mxu0 0
      %459 = vmatmul.mubr.bf16.gmra.mrb[0].mxu0 %v360
      %v460 = vpop.f32.mrb[0].mxu0
      %v461 = vadd.f32 0.0, %v460
      %v462 = vpop.f32.mrb[0].mxu0
      %v463 = vpop.f32.mrb[0].mxu0
      %v464 = vadd.f32 0.0, %v463
      %v465 = vpop.f32.mrb[0].mxu0
      %466 = vmatprep.mubr.bf16.mxu0 0
      %467 = vmatmul.mubr.bf16.gmra.mrb[0].mxu0 %v361
      %v468 = vpop.f32.mrb[0].mxu0
      %v469 = vadd.f32 0.0, %v468
      %v470 = vpop.f32.mrb[0].mxu0
      %v471 = vpop.f32.mrb[0].mxu0
      %v472 = vadd.f32 0.0, %v471
      %v473 = vpop.f32.mrb[0].mxu0
      %474 = vdwg.mxu0
      %v475 = vadd.f32 %v362, %v413
      %v476 = vadd.f32 %v363, %v416
      %v477 = vadd.f32 %v364, %v421
      %v478 = vadd.f32 %v365, %v424
      %v479 = vadd.f32 %v366, %v429
      %v480 = vadd.f32 %v367, %v432
      %v481 = vadd.f32 %v368, %v437
      %v482 = vadd.f32 %v369, %v440
      %v483 = vadd.f32 %v370, %v445
      %v484 = vadd.f32 %v371, %v448
      %v485 = vadd.f32 %v372, %v453
      %v486 = vadd.f32 %v373, %v456
      %v487 = vadd.f32 %v374, %v461
      %v488 = vadd.f32 %v375, %v464
      %v489 = vadd.f32 %v376, %v469
      %v490 = vadd.f32 %v377, %v472
      %491 = vst [vmem:[#allocation2 + $0x8] sm:$0xff] %v475
      %492 = vst [vmem:[#allocation2 + $0x20] sm:$0xff] %v476
      %493 = vst [vmem:[#allocation2 + $0x38] sm:$0xff] %v477
      %494 = vst [vmem:[#allocation2 + $0x50] sm:$0xff] %v478
      %495 = vst [vmem:[#allocation2 + $0x68] sm:$0xff] %v479
      %496 = vst [vmem:[#allocation2 + $0x80] sm:$0xff] %v480
      %497 = vst [vmem:[#allocation2 + $0x98] sm:$0xff] %v481
      %498 = vst [vmem:[#allocation2 + $0xb0] sm:$0xff] %v482
      %499 = vst [vmem:[#allocation2 + $0xc8] sm:$0xff] %v483
      %500 = vst [vmem:[#allocation2 + $0xe0] sm:$0xff] %v484
      %501 = vst [vmem:[#allocation2 + $0xf8] sm:$0xff] %v485
      %502 = vst [vmem:[#allocation2 + $0x110] sm:$0xff] %v486
      %503 = vst [vmem:[#allocation2 + $0x128] sm:$0xff] %v487
      %504 = vst [vmem:[#allocation2 + $0x140] sm:$0xff] %v488
      %505 = vst [vmem:[#allocation2 + $0x158] sm:$0xff] %v489
      %506 = vst [vmem:[#allocation2 + $0x170] sm:$0xff] %v490
      %s507 = scalar_lea.vmem %s3, 64
      %v508 = vld [vmem:[%s507] sm:$0xff]
      %v509 = vld [vmem:[%s507 + $0x8] sm:$0xff]
      %v510 = vld [vmem:[%s507 + $0x10] sm:$0xff]
      %v511 = vld [vmem:[%s507 + $0x18] sm:$0xff]
      %v512 = vunpack.c.l.s8.bf16 %v508
      %v513 = vunpack.c.h.s8.bf16 %v508
      %v514 = vunpack.c.l.s8.bf16 %v509
      %v515 = vunpack.c.h.s8.bf16 %v509
      %v516 = vunpack.c.l.s8.bf16 %v510
      %v517 = vunpack.c.h.s8.bf16 %v510
      %v518 = vunpack.c.l.s8.bf16 %v511
      %v519 = vunpack.c.h.s8.bf16 %v511
      %v520 = vld [vmem:[#allocation2 + $0x10] sm:$0xff]
      %v521 = vld [vmem:[#allocation2 + $0x28] sm:$0xff]
      %v522 = vld [vmem:[#allocation2 + $0x40] sm:$0xff]
      %v523 = vld [vmem:[#allocation2 + $0x58] sm:$0xff]
      %v524 = vld [vmem:[#allocation2 + $0x70] sm:$0xff]
      %v525 = vld [vmem:[#allocation2 + $0x88] sm:$0xff]
      %v526 = vld [vmem:[#allocation2 + $0xa0] sm:$0xff]
      %v527 = vld [vmem:[#allocation2 + $0xb8] sm:$0xff]
      %v528 = vld [vmem:[#allocation2 + $0xd0] sm:$0xff]
      %v529 = vld [vmem:[#allocation2 + $0xe8] sm:$0xff]
      %v530 = vld [vmem:[#allocation2 + $0x100] sm:$0xff]
      %v531 = vld [vmem:[#allocation2 + $0x118] sm:$0xff]
      %v532 = vld [vmem:[#allocation2 + $0x130] sm:$0xff]
      %v533 = vld [vmem:[#allocation2 + $0x148] sm:$0xff]
      %v534 = vld [vmem:[#allocation2 + $0x160] sm:$0xff]
      %v535 = vld [vmem:[#allocation2 + $0x178] sm:$0xff]
      %536 = vmatprep.subr.bf16.mxu0 0
      %537 = vmatpush1.bf16.msra.mxu0 %v204
      %538 = vmatprep.subr.bf16.mxu0 0
      %539 = vmatpush1.bf16.msra.mxu0 %v205
      %540 = vmatprep.subr.bf16.mxu0 0
      %541 = vmatpush1.bf16.msra.mxu0 %v206
      %542 = vmatprep.subr.bf16.mxu0 0
      %543 = vmatpush1.bf16.msra.mxu0 %v207
      %544 = vmatprep.subr.bf16.mxu0 0
      %545 = vmatpush1.bf16.msra.mxu0 %v208
      %546 = vmatprep.subr.bf16.mxu0 0
      %547 = vmatpush1.bf16.msra.mxu0 %v209
      %548 = vmatprep.subr.bf16.mxu0 0
      %549 = vmatpush1.bf16.msra.mxu0 %v210
      %550 = vmatprep.subr.bf16.mxu0 0
      %551 = vmatpush1.bf16.msra.mxu0 %v211
      %552 = vmatprep.subr.bf16.mxu0 0
      %553 = vmatpush1.bf16.msra.mxu0 0
      %554 = vmatprep.subr.bf16.mxu0 0
      %555 = vmatpush1.bf16.msra.mxu0 0
      %556 = vmatprep.subr.bf16.mxu0 0
      %557 = vmatpush1.bf16.msra.mxu0 0
      %558 = vmatprep.subr.bf16.mxu0 0
      %559 = vmatpush1.bf16.msra.mxu0 0
      %560 = vmatprep.subr.bf16.mxu0 0
      %561 = vmatpush1.bf16.msra.mxu0 0
      %562 = vmatprep.subr.bf16.mxu0 0
      %563 = vmatpush1.bf16.msra.mxu0 0
      %564 = vmatprep.subr.bf16.mxu0 0
      %565 = vmatpush1.bf16.msra.mxu0 0
      %566 = vmatprep.subr.bf16.mxu0 0
      %567 = vmatpush1.bf16.msra.mxu0 0
      %568 = vmatprep.mubr.bf16.mxu0 0
      %569 = vmatmul.mubr.bf16.gmra.mrb[0].mxu0 %v512
      %v570 = vpop.f32.mrb[0].mxu0
      %v571 = vadd.f32 0.0, %v570
      %v572 = vpop.f32.mrb[0].mxu0
      %v573 = vpop.f32.mrb[0].mxu0
      %v574 = vadd.f32 0.0, %v573
      %v575 = vpop.f32.mrb[0].mxu0
      %576 = vmatprep.mubr.bf16.mxu0 0
      %577 = vmatmul.mubr.bf16.gmra.mrb[0].mxu0 %v513
      %v578 = vpop.f32.mrb[0].mxu0
      %v579 = vadd.f32 0.0, %v578
      %v580 = vpop.f32.mrb[0].mxu0
      %v581 = vpop.f32.mrb[0].mxu0
      %v582 = vadd.f32 0.0, %v581
      %v583 = vpop.f32.mrb[0].mxu0
      %584 = vmatprep.mubr.bf16.mxu0 0
      %585 = vmatmul.mubr.bf16.gmra.mrb[0].mxu0 %v514
      %v586 = vpop.f32.mrb[0].mxu0
      %v587 = vadd.f32 0.0, %v586
      %v588 = vpop.f32.mrb[0].mxu0
      %v589 = vpop.f32.mrb[0].mxu0
      %v590 = vadd.f32 0.0, %v589
      %v591 = vpop.f32.mrb[0].mxu0
      %592 = vmatprep.mubr.bf16.mxu0 0
      %593 = vmatmul.mubr.bf16.gmra.mrb[0].mxu0 %v515
      %v594 = vpop.f32.mrb[0].mxu0
      %v595 = vadd.f32 0.0, %v594
      %v596 = vpop.f32.mrb[0].mxu0
      %v597 = vpop.f32.mrb[0].mxu0
      %v598 = vadd.f32 0.0, %v597
      %v599 = vpop.f32.mrb[0].mxu0
      %600 = vmatprep.mubr.bf16.mxu0 0
      %601 = vmatmul.mubr.bf16.gmra.mrb[0].mxu0 %v516
      %v602 = vpop.f32.mrb[0].mxu0
      %v603 = vadd.f32 0.0, %v602
      %v604 = vpop.f32.mrb[0].mxu0
      %v605 = vpop.f32.mrb[0].mxu0
      %v606 = vadd.f32 0.0, %v605
      %v607 = vpop.f32.mrb[0].mxu0
      %608 = vmatprep.mubr.bf16.mxu0 0
      %609 = vmatmul.mubr.bf16.gmra.mrb[0].mxu0 %v517
      %v610 = vpop.f32.mrb[0].mxu0
      %v611 = vadd.f32 0.0, %v610
      %v612 = vpop.f32.mrb[0].mxu0
      %v613 = vpop.f32.mrb[0].mxu0
      %v614 = vadd.f32 0.0, %v613
      %v615 = vpop.f32.mrb[0].mxu0
      %616 = vmatprep.mubr.bf16.mxu0 0
      %617 = vmatmul.mubr.bf16.gmra.mrb[0].mxu0 %v518
      %v618 = vpop.f32.mrb[0].mxu0
      %v619 = vadd.f32 0.0, %v618
      %v620 = vpop.f32.mrb[0].mxu0
      %v621 = vpop.f32.mrb[0].mxu0
      %v622 = vadd.f32 0.0, %v621
      %v623 = vpop.f32.mrb[0].mxu0
      %624 = vmatprep.mubr.bf16.mxu0 0
      %625 = vmatmul.mubr.bf16.gmra.mrb[0].mxu0 %v519
      %v626 = vpop.f32.mrb[0].mxu0
      %v627 = vadd.f32 0.0, %v626
      %v628 = vpop.f32.mrb[0].mxu0
      %v629 = vpop.f32.mrb[0].mxu0
      %v630 = vadd.f32 0.0, %v629
      %v631 = vpop.f32.mrb[0].mxu0
      %632 = vdwg.mxu0
      %v633 = vadd.f32 %v520, %v571
      %v634 = vadd.f32 %v521, %v574
      %v635 = vadd.f32 %v522, %v579
      %v636 = vadd.f32 %v523, %v582
      %v637 = vadd.f32 %v524, %v587
      %v638 = vadd.f32 %v525, %v590
      %v639 = vadd.f32 %v526, %v595
      %v640 = vadd.f32 %v527, %v598
      %v641 = vadd.f32 %v528, %v603
      %v642 = vadd.f32 %v529, %v606
      %v643 = vadd.f32 %v530, %v611
      %v644 = vadd.f32 %v531, %v614
      %v645 = vadd.f32 %v532, %v619
      %v646 = vadd.f32 %v533, %v622
      %v647 = vadd.f32 %v534, %v627
      %v648 = vadd.f32 %v535, %v630
      %649 = vst [vmem:[#allocation2 + $0x10] sm:$0xff] %v633
      %650 = vst [vmem:[#allocation2 + $0x28] sm:$0xff] %v634
      %651 = vst [vmem:[#allocation2 + $0x40] sm:$0xff] %v635
      %652 = vst [vmem:[#allocation2 + $0x58] sm:$0xff] %v636
      %653 = vst [vmem:[#allocation2 + $0x70] sm:$0xff] %v637
      %654 = vst [vmem:[#allocation2 + $0x88] sm:$0xff] %v638
      %655 = vst [vmem:[#allocation2 + $0xa0] sm:$0xff] %v639
      %656 = vst [vmem:[#allocation2 + $0xb8] sm:$0xff] %v640
      %657 = vst [vmem:[#allocation2 + $0xd0] sm:$0xff] %v641
      %658 = vst [vmem:[#allocation2 + $0xe8] sm:$0xff] %v642
      %659 = vst [vmem:[#allocation2 + $0x100] sm:$0xff] %v643
      %660 = vst [vmem:[#allocation2 + $0x118] sm:$0xff] %v644
      %661 = vst [vmem:[#allocation2 + $0x130] sm:$0xff] %v645
      %662 = vst [vmem:[#allocation2 + $0x148] sm:$0xff] %v646
      %663 = vst [vmem:[#allocation2 + $0x160] sm:$0xff] %v647
      %664 = vst [vmem:[#allocation2 + $0x178] sm:$0xff] %v648
    $region49: #{rgcn_conv_pallas.1} parent=1 // pred_fallthru
      _
    // Predicated region
    $region50: #{rgcn_conv_pallas.1} parent=1 // pred_check
      %p665 = pneg %p70
    $region51: #{rgcn_conv_pallas.1} parent=1 // pred_check_branch
      %667 = sbr.rel (%p665) target = $region53
    $region52: #{rgcn_conv_pallas.1} parent=1 // pred_region
      %v668 = vld [vmem:[#allocation2] sm:$0xff]
      %v669 = vld [vmem:[#allocation2 + $0x8] sm:$0xff]
      %v670 = vld [vmem:[#allocation2 + $0x10] sm:$0xff]
      %v671 = vld [vmem:[#allocation2 + $0x18] sm:$0xff]
      %v672 = vld [vmem:[#allocation2 + $0x20] sm:$0xff]
      %v673 = vld [vmem:[#allocation2 + $0x28] sm:$0xff]
      %v674 = vld [vmem:[#allocation2 + $0x30] sm:$0xff]
      %v675 = vld [vmem:[#allocation2 + $0x38] sm:$0xff]
      %v676 = vld [vmem:[#allocation2 + $0x40] sm:$0xff]
      %v677 = vld [vmem:[#allocation2 + $0x48] sm:$0xff]
      %v678 = vld [vmem:[#allocation2 + $0x50] sm:$0xff]
      %v679 = vld [vmem:[#allocation2 + $0x58] sm:$0xff]
      %v680 = vld [vmem:[#allocation2 + $0x60] sm:$0xff]
      %v681 = vld [vmem:[#allocation2 + $0x68] sm:$0xff]
      %v682 = vld [vmem:[#allocation2 + $0x70] sm:$0xff]
      %v683 = vld [vmem:[#allocation2 + $0x78] sm:$0xff]
      %v684 = vld [vmem:[#allocation2 + $0x80] sm:$0xff]
      %v685 = vld [vmem:[#allocation2 + $0x88] sm:$0xff]
      %v686 = vld [vmem:[#allocation2 + $0x90] sm:$0xff]
      %v687 = vld [vmem:[#allocation2 + $0x98] sm:$0xff]
      %v688 = vld [vmem:[#allocation2 + $0xa0] sm:$0xff]
      %v689 = vld [vmem:[#allocation2 + $0xa8] sm:$0xff]
      %v690 = vld [vmem:[#allocation2 + $0xb0] sm:$0xff]
      %v691 = vld [vmem:[#allocation2 + $0xb8] sm:$0xff]
      %v692 = vld [vmem:[#allocation2 + $0xc0] sm:$0xff]
      %v693 = vld [vmem:[#allocation2 + $0xc8] sm:$0xff]
      %v694 = vld [vmem:[#allocation2 + $0xd0] sm:$0xff]
      %v695 = vld [vmem:[#allocation2 + $0xd8] sm:$0xff]
      %v696 = vld [vmem:[#allocation2 + $0xe0] sm:$0xff]
      %v697 = vld [vmem:[#allocation2 + $0xe8] sm:$0xff]
      %v698 = vld [vmem:[#allocation2 + $0xf0] sm:$0xff]
      %v699 = vld [vmem:[#allocation2 + $0xf8] sm:$0xff]
      %v700 = vld [vmem:[#allocation2 + $0x100] sm:$0xff]
      %v701 = vld [vmem:[#allocation2 + $0x108] sm:$0xff]
      %v702 = vld [vmem:[#allocation2 + $0x110] sm:$0xff]
      %v703 = vld [vmem:[#allocation2 + $0x118] sm:$0xff]
      %v704 = vld [vmem:[#allocation2 + $0x120] sm:$0xff]
      %v705 = vld [vmem:[#allocation2 + $0x128] sm:$0xff]
      %v706 = vld [vmem:[#allocation2 + $0x130] sm:$0xff]
      %v707 = vld [vmem:[#allocation2 + $0x138] sm:$0xff]
      %v708 = vld [vmem:[#allocation2 + $0x140] sm:$0xff]
      %v709 = vld [vmem:[#allocation2 + $0x148] sm:$0xff]
      %v710 = vld [vmem:[#allocation2 + $0x150] sm:$0xff]
      %v711 = vld [vmem:[#allocation2 + $0x158] sm:$0xff]
      %v712 = vld [vmem:[#allocation2 + $0x160] sm:$0xff]
      %v713 = vld [vmem:[#allocation2 + $0x168] sm:$0xff]
      %v714 = vld [vmem:[#allocation2 + $0x170] sm:$0xff]
      %v715 = vld [vmem:[#allocation2 + $0x178] sm:$0xff]
      %v716 = vld [vmem:[#allocation9] sm:$0xff]
      %v717 = vld [vmem:[#allocation9 + $0x8] sm:$0xff]
      %v718 = vld [vmem:[#allocation9 + $0x10] sm:$0xff]
      %v719 = vld [vmem:[#allocation9 + $0x18] sm:$0xff]
      %v720 = vld [vmem:[#allocation9 + $0x20] sm:$0xff]
      %v721 = vld [vmem:[#allocation9 + $0x28] sm:$0xff]
      %v722 = vld [vmem:[#allocation9 + $0x30] sm:$0xff]
      %v723 = vld [vmem:[#allocation9 + $0x38] sm:$0xff]
      %v724 = vld [vmem:[#allocation9 + $0x40] sm:$0xff]
      %v725 = vld [vmem:[#allocation9 + $0x48] sm:$0xff]
      %v726 = vld [vmem:[#allocation9 + $0x50] sm:$0xff]
      %v727 = vld [vmem:[#allocation9 + $0x58] sm:$0xff]
      %v728 = vld [vmem:[#allocation9 + $0x60] sm:$0xff]
      %v729 = vld [vmem:[#allocation9 + $0x68] sm:$0xff]
      %v730 = vld [vmem:[#allocation9 + $0x70] sm:$0xff]
      %v731 = vld [vmem:[#allocation9 + $0x78] sm:$0xff]
      %v732 = vld [vmem:[#allocation9 + $0x80] sm:$0xff]
      %v733 = vld [vmem:[#allocation9 + $0x88] sm:$0xff]
      %v734 = vld [vmem:[#allocation9 + $0x90] sm:$0xff]
      %v735 = vld [vmem:[#allocation9 + $0x98] sm:$0xff]
      %v736 = vld [vmem:[#allocation9 + $0xa0] sm:$0xff]
      %v737 = vld [vmem:[#allocation9 + $0xa8] sm:$0xff]
      %v738 = vld [vmem:[#allocation9 + $0xb0] sm:$0xff]
      %v739 = vld [vmem:[#allocation9 + $0xb8] sm:$0xff]
      %v740 = vld [vmem:[#allocation9 + $0xc0] sm:$0xff]
      %v741 = vld [vmem:[#allocation9 + $0xc8] sm:$0xff]
      %v742 = vld [vmem:[#allocation9 + $0xd0] sm:$0xff]
      %v743 = vld [vmem:[#allocation9 + $0xd8] sm:$0xff]
      %v744 = vld [vmem:[#allocation9 + $0xe0] sm:$0xff]
      %v745 = vld [vmem:[#allocation9 + $0xe8] sm:$0xff]
      %v746 = vld [vmem:[#allocation9 + $0xf0] sm:$0xff]
      %v747 = vld [vmem:[#allocation9 + $0xf8] sm:$0xff]
      %v748 = vld [vmem:[#allocation9 + $0x100] sm:$0xff]
      %v749 = vld [vmem:[#allocation9 + $0x108] sm:$0xff]
      %v750 = vld [vmem:[#allocation9 + $0x110] sm:$0xff]
      %v751 = vld [vmem:[#allocation9 + $0x118] sm:$0xff]
      %v752 = vld [vmem:[#allocation9 + $0x120] sm:$0xff]
      %v753 = vld [vmem:[#allocation9 + $0x128] sm:$0xff]
      %v754 = vld [vmem:[#allocation9 + $0x130] sm:$0xff]
      %v755 = vld [vmem:[#allocation9 + $0x138] sm:$0xff]
      %v756 = vld [vmem:[#allocation9 + $0x140] sm:$0xff]
      %v757 = vld [vmem:[#allocation9 + $0x148] sm:$0xff]
      %v758 = vld [vmem:[#allocation9 + $0x150] sm:$0xff]
      %v759 = vld [vmem:[#allocation9 + $0x158] sm:$0xff]
      %v760 = vld [vmem:[#allocation9 + $0x160] sm:$0xff]
      %v761 = vld [vmem:[#allocation9 + $0x168] sm:$0xff]
      %v762 = vld [vmem:[#allocation9 + $0x170] sm:$0xff]
      %v763 = vld [vmem:[#allocation9 + $0x178] sm:$0xff]
      %v764 = vmul.f32 %v668, %v716
      %v765 = vmul.f32 %v669, %v717
      %v766 = vmul.f32 %v670, %v718
      %v767 = vmul.f32 %v671, %v719
      %v768 = vmul.f32 %v672, %v720
      %v769 = vmul.f32 %v673, %v721
      %v770 = vmul.f32 %v674, %v722
      %v771 = vmul.f32 %v675, %v723
      %v772 = vmul.f32 %v676, %v724
      %v773 = vmul.f32 %v677, %v725
      %v774 = vmul.f32 %v678, %v726
      %v775 = vmul.f32 %v679, %v727
      %v776 = vmul.f32 %v680, %v728
      %v777 = vmul.f32 %v681, %v729
      %v778 = vmul.f32 %v682, %v730
      %v779 = vmul.f32 %v683, %v731
      %v780 = vmul.f32 %v684, %v732
      %v781 = vmul.f32 %v685, %v733
      %v782 = vmul.f32 %v686, %v734
      %v783 = vmul.f32 %v687, %v735
      %v784 = vmul.f32 %v688, %v736
      %v785 = vmul.f32 %v689, %v737
      %v786 = vmul.f32 %v690, %v738
      %v787 = vmul.f32 %v691, %v739
      %v788 = vmul.f32 %v692, %v740
      %v789 = vmul.f32 %v693, %v741
      %v790 = vmul.f32 %v694, %v742
      %v791 = vmul.f32 %v695, %v743
      %v792 = vmul.f32 %v696, %v744
      %v793 = vmul.f32 %v697, %v745
      %v794 = vmul.f32 %v698, %v746
      %v795 = vmul.f32 %v699, %v747
      %v796 = vmul.f32 %v700, %v748
      %v797 = vmul.f32 %v701, %v749
      %v798 = vmul.f32 %v702, %v750
      %v799 = vmul.f32 %v703, %v751
      %v800 = vmul.f32 %v704, %v752
      %v801 = vmul.f32 %v705, %v753
      %v802 = vmul.f32 %v706, %v754
      %v803 = vmul.f32 %v707, %v755
      %v804 = vmul.f32 %v708, %v756
      %v805 = vmul.f32 %v709, %v757
      %v806 = vmul.f32 %v710, %v758
      %v807 = vmul.f32 %v711, %v759
      %v808 = vmul.f32 %v712, %v760
      %v809 = vmul.f32 %v713, %v761
      %v810 = vmul.f32 %v714, %v762
      %v811 = vmul.f32 %v715, %v763
      %v812 = vpack.c.bf16 %v767, %v764
      %v813 = vpack.c.bf16 %v768, %v765
      %v814 = vpack.c.bf16 %v769, %v766
      %v815 = vpack.c.bf16 %v773, %v770
      %v816 = vpack.c.bf16 %v774, %v771
      %v817 = vpack.c.bf16 %v775, %v772
      %v818 = vpack.c.bf16 %v779, %v776
      %v819 = vpack.c.bf16 %v780, %v777
      %v820 = vpack.c.bf16 %v781, %v778
      %v821 = vpack.c.bf16 %v785, %v782
      %v822 = vpack.c.bf16 %v786, %v783
      %v823 = vpack.c.bf16 %v787, %v784
      %v824 = vpack.c.bf16 %v791, %v788
      %v825 = vpack.c.bf16 %v792, %v789
      %v826 = vpack.c.bf16 %v793, %v790
      %v827 = vpack.c.bf16 %v797, %v794
      %v828 = vpack.c.bf16 %v798, %v795
      %v829 = vpack.c.bf16 %v799, %v796
      %v830 = vpack.c.bf16 %v803, %v800
      %v831 = vpack.c.bf16 %v804, %v801
      %v832 = vpack.c.bf16 %v805, %v802
      %v833 = vpack.c.bf16 %v809, %v806
      %v834 = vpack.c.bf16 %v810, %v807
      %v835 = vpack.c.bf16 %v811, %v808
      %v836 = vld [vmem:[#allocation5] sm:$0xf]
      %v837 = vld [vmem:[#allocation5 + $0x4] sm:$0xf]
      %v838 = vld [vmem:[#allocation5 + $0x8] sm:$0xf]
      %v839 = vld [vmem:[#allocation5 + $0xc] sm:$0xf]
      %v840 = vld [vmem:[#allocation5 + $0x10] sm:$0xf]
      %v841 = vld [vmem:[#allocation5 + $0x14] sm:$0xf]
      %v842 = vld [vmem:[#allocation5 + $0x18] sm:$0xf]
      %v843 = vld [vmem:[#allocation5 + $0x1c] sm:$0xf]
      %v844 = vld [vmem:[#allocation5 + $0x20] sm:$0xf]
      %v845 = vld [vmem:[#allocation5 + $0x24] sm:$0xf]
      %v846 = vld [vmem:[#allocation5 + $0x28] sm:$0xf]
      %v847 = vld [vmem:[#allocation5 + $0x2c] sm:$0xf]
      %v848 = vld [vmem:[#allocation5 + $0x30] sm:$0xf]
      %v849 = vld [vmem:[#allocation5 + $0x34] sm:$0xf]
      %v850 = vld [vmem:[#allocation5 + $0x38] sm:$0xf]
      %v851 = vld [vmem:[#allocation5 + $0x3c] sm:$0xf]
      %v852 = vld [vmem:[#allocation5 + $0x40] sm:$0xf]
      %v853 = vld [vmem:[#allocation5 + $0x44] sm:$0xf]
      %v854 = vld [vmem:[#allocation5 + $0x48] sm:$0xf]
      %v855 = vld [vmem:[#allocation5 + $0x4c] sm:$0xf]
      %v856 = vld [vmem:[#allocation5 + $0x50] sm:$0xf]
      %v857 = vld [vmem:[#allocation5 + $0x54] sm:$0xf]
      %v858 = vld [vmem:[#allocation5 + $0x58] sm:$0xf]
      %v859 = vld [vmem:[#allocation5 + $0x5c] sm:$0xf]
      %v860 = vld [vmem:[#allocation5 + $0x60] sm:$0xf]
      %v861 = vld [vmem:[#allocation5 + $0x64] sm:$0xf]
      %v862 = vld [vmem:[#allocation5 + $0x68] sm:$0xf]
      %v863 = vld [vmem:[#allocation5 + $0x6c] sm:$0xf]
      %v864 = vld [vmem:[#allocation5 + $0x70] sm:$0xf]
      %v865 = vld [vmem:[#allocation5 + $0x74] sm:$0xf]
      %v866 = vld [vmem:[#allocation5 + $0x78] sm:$0xf]
      %v867 = vld [vmem:[#allocation5 + $0x7c] sm:$0xf]
      %v868 = vld [vmem:[#allocation5 + $0x80] sm:$0xf]
      %v869 = vld [vmem:[#allocation5 + $0x84] sm:$0xf]
      %v870 = vld [vmem:[#allocation5 + $0x88] sm:$0xf]
      %v871 = vld [vmem:[#allocation5 + $0x8c] sm:$0xf]
      %v872 = vld [vmem:[#allocation5 + $0x90] sm:$0xf]
      %v873 = vld [vmem:[#allocation5 + $0x94] sm:$0xf]
      %v874 = vld [vmem:[#allocation5 + $0x98] sm:$0xf]
      %v875 = vld [vmem:[#allocation5 + $0x9c] sm:$0xf]
      %v876 = vld [vmem:[#allocation5 + $0xa0] sm:$0xf]
      %v877 = vld [vmem:[#allocation5 + $0xa4] sm:$0xf]
      %v878 = vld [vmem:[#allocation5 + $0xa8] sm:$0xf]
      %v879 = vld [vmem:[#allocation5 + $0xac] sm:$0xf]
      %v880 = vld [vmem:[#allocation5 + $0xb0] sm:$0xf]
      %v881 = vld [vmem:[#allocation5 + $0xb4] sm:$0xf]
      %v882 = vld [vmem:[#allocation5 + $0xb8] sm:$0xf]
      %v883 = vld [vmem:[#allocation5 + $0xbc] sm:$0xf]
      %v884 = vld [vmem:[%s1] sm:$0xf]
      %v885 = vld [vmem:[%s1 + $0x4] sm:$0xf]
      %v886 = vld [vmem:[%s1 + $0x8] sm:$0xf]
      %v887 = vld [vmem:[%s1 + $0xc] sm:$0xf]
      %v888 = vld [vmem:[%s1 + $0x10] sm:$0xf]
      %v889 = vld [vmem:[%s1 + $0x14] sm:$0xf]
      %v890 = vld [vmem:[%s1 + $0x18] sm:$0xf]
      %v891 = vld [vmem:[%s1 + $0x1c] sm:$0xf]
      %v892 = vld [vmem:[%s1 + $0x20] sm:$0xf]
      %v893 = vld [vmem:[%s1 + $0x24] sm:$0xf]
      %v894 = vld [vmem:[%s1 + $0x28] sm:$0xf]
      %v895 = vld [vmem:[%s1 + $0x2c] sm:$0xf]
      %v896 = vld [vmem:[%s1 + $0x30] sm:$0xf]
      %v897 = vld [vmem:[%s1 + $0x34] sm:$0xf]
      %v898 = vld [vmem:[%s1 + $0x38] sm:$0xf]
      %v899 = vld [vmem:[%s1 + $0x3c] sm:$0xf]
      %v900 = vld [vmem:[#allocation7] sm:$0xf]
      %v901 = vld [vmem:[#allocation7 + $0x4] sm:$0xf]
      %v902 = vld [vmem:[#allocation7 + $0x8] sm:$0xf]
      %v903 = vld [vmem:[#allocation7 + $0xc] sm:$0xf]
      %v904 = vld [vmem:[#allocation7 + $0x10] sm:$0xf]
      %v905 = vld [vmem:[#allocation7 + $0x14] sm:$0xf]
      %v906 = vld [vmem:[#allocation7 + $0x18] sm:$0xf]
      %v907 = vld [vmem:[#allocation7 + $0x1c] sm:$0xf]
      %v908 = vld [vmem:[#allocation7 + $0x20] sm:$0xf]
      %v909 = vld [vmem:[#allocation7 + $0x24] sm:$0xf]
      %v910 = vld [vmem:[#allocation7 + $0x28] sm:$0xf]
      %v911 = vld [vmem:[#allocation7 + $0x2c] sm:$0xf]
      %v912 = vld [vmem:[#allocation7 + $0x30] sm:$0xf]
      %v913 = vld [vmem:[#allocation7 + $0x34] sm:$0xf]
      %v914 = vld [vmem:[#allocation7 + $0x38] sm:$0xf]
      %v915 = vld [vmem:[#allocation7 + $0x3c] sm:$0xf]
      %v932 = vunpack.c.l.b16 %v884
      %v933 = vunpack.c.l.b16 %v885
      %v934 = vunpack.c.l.b16 %v886
      %v935 = vunpack.c.l.b16 %v887
      %v936 = vunpack.c.l.b16 %v888
      %v937 = vunpack.c.l.b16 %v889
      %v938 = vunpack.c.l.b16 %v890
      %v939 = vunpack.c.l.b16 %v891
      %v940 = vunpack.c.l.b16 %v892
      %v941 = vunpack.c.l.b16 %v893
      %v942 = vunpack.c.l.b16 %v894
      %v943 = vunpack.c.l.b16 %v895
      %v944 = vunpack.c.l.b16 %v896
      %v945 = vunpack.c.l.b16 %v897
      %v946 = vunpack.c.l.b16 %v898
      %v947 = vunpack.c.l.b16 %v899
      %v948 = vpack.c.b16 %v933, %v932
      %v949 = vpack.c.b16 %v935, %v934
      %v950 = vpack.c.b16 %v937, %v936
      %v951 = vpack.c.b16 %v939, %v938
      %v952 = vpack.c.b16 %v941, %v940
      %v953 = vpack.c.b16 %v943, %v942
      %v954 = vpack.c.b16 %v945, %v944
      %v955 = vpack.c.b16 %v947, %v946
      %v980 = vunpack.c.l.b16 %v900
      %v981 = vunpack.c.l.b16 %v901
      %v982 = vunpack.c.l.b16 %v902
      %v983 = vunpack.c.l.b16 %v903
      %v984 = vunpack.c.l.b16 %v904
      %v985 = vunpack.c.l.b16 %v905
      %v986 = vunpack.c.l.b16 %v906
      %v987 = vunpack.c.l.b16 %v907
      %v988 = vunpack.c.l.b16 %v908
      %v989 = vunpack.c.l.b16 %v909
      %v990 = vunpack.c.l.b16 %v910
      %v991 = vunpack.c.l.b16 %v911
      %v992 = vunpack.c.l.b16 %v912
      %v993 = vunpack.c.l.b16 %v913
      %v994 = vunpack.c.l.b16 %v914
      %v995 = vunpack.c.l.b16 %v915
      %v996 = vpack.c.b16 %v981, %v980
      %v997 = vpack.c.b16 %v983, %v982
      %v998 = vpack.c.b16 %v985, %v984
      %v999 = vpack.c.b16 %v987, %v986
      %v1000 = vpack.c.b16 %v989, %v988
      %v1001 = vpack.c.b16 %v991, %v990
      %v1002 = vpack.c.b16 %v993, %v992
      %v1003 = vpack.c.b16 %v995, %v994
      %1012 = vmatprep.subr.bf16.mxu0 0
      %1013 = vmatpush1.bf16.msra.mxu0 %v996
      %1014 = vmatprep.subr.bf16.mxu0 0
      %1015 = vmatpush1.bf16.msra.mxu0 %v997
      %1016 = vmatprep.subr.bf16.mxu0 0
      %1017 = vmatpush1.bf16.msra.mxu0 %v998
      %1018 = vmatprep.subr.bf16.mxu0 0
      %1019 = vmatpush1.bf16.msra.mxu0 %v999
      %1020 = vmatprep.subr.bf16.mxu0 0
      %1021 = vmatpush1.bf16.msra.mxu0 %v1000
      %1022 = vmatprep.subr.bf16.mxu0 0
      %1023 = vmatpush1.bf16.msra.mxu0 %v1001
      %1024 = vmatprep.subr.bf16.mxu0 0
      %1025 = vmatpush1.bf16.msra.mxu0 %v1002
      %1026 = vmatprep.subr.bf16.mxu0 0
      %1027 = vmatpush1.bf16.msra.mxu0 %v1003
      %1028 = vmatprep.subr.bf16.mxu0 0
      %1029 = vmatpush1.bf16.msra.mxu0 0
      %1030 = vmatprep.subr.bf16.mxu0 0
      %1031 = vmatpush1.bf16.msra.mxu0 0
      %1032 = vmatprep.subr.bf16.mxu0 0
      %1033 = vmatpush1.bf16.msra.mxu0 0
      %1034 = vmatprep.subr.bf16.mxu0 0
      %1035 = vmatpush1.bf16.msra.mxu0 0
      %1036 = vmatprep.subr.bf16.mxu0 0
      %1037 = vmatpush1.bf16.msra.mxu0 0
      %1038 = vmatprep.subr.bf16.mxu0 0
      %1039 = vmatpush1.bf16.msra.mxu0 0
      %1040 = vmatprep.subr.bf16.mxu0 0
      %1041 = vmatpush1.bf16.msra.mxu0 0
      %1042 = vmatprep.subr.bf16.mxu0 0
      %1043 = vmatpush1.bf16.msra.mxu0 0
      %1044 = vmatprep.mubr.bf16.mxu0 0
      %1045 = vmatmul.mubr.bf16.gmra.mrb[0].mxu0 %v948
      %v1046 = vpop.f32.mrb[0].mxu0
      %v1047 = vadd.f32 0.0, %v1046
      %v1048 = vpop.f32.mrb[0].mxu0
      %v1049 = vpop.f32.mrb[0].mxu0
      %v1050 = vadd.f32 0.0, %v1049
      %v1051 = vpop.f32.mrb[0].mxu0
      %1052 = vmatprep.mubr.bf16.mxu0 0
      %1053 = vmatmul.mubr.bf16.gmra.mrb[0].mxu0 %v949
      %v1054 = vpop.f32.mrb[0].mxu0
      %v1055 = vadd.f32 0.0, %v1054
      %v1056 = vpop.f32.mrb[0].mxu0
      %v1057 = vpop.f32.mrb[0].mxu0
      %v1058 = vadd.f32 0.0, %v1057
      %v1059 = vpop.f32.mrb[0].mxu0
      %1060 = vmatprep.mubr.bf16.mxu0 0
      %1061 = vmatmul.mubr.bf16.gmra.mrb[0].mxu0 %v950
      %v1062 = vpop.f32.mrb[0].mxu0
      %v1063 = vadd.f32 0.0, %v1062
      %v1064 = vpop.f32.mrb[0].mxu0
      %v1065 = vpop.f32.mrb[0].mxu0
      %v1066 = vadd.f32 0.0, %v1065
      %v1067 = vpop.f32.mrb[0].mxu0
      %1068 = vmatprep.mubr.bf16.mxu0 0
      %1069 = vmatmul.mubr.bf16.gmra.mrb[0].mxu0 %v951
      %v1070 = vpop.f32.mrb[0].mxu0
      %v1071 = vadd.f32 0.0, %v1070
      %v1072 = vpop.f32.mrb[0].mxu0
      %v1073 = vpop.f32.mrb[0].mxu0
      %v1074 = vadd.f32 0.0, %v1073
      %v1075 = vpop.f32.mrb[0].mxu0
      %1076 = vmatprep.mubr.bf16.mxu0 0
      %1077 = vmatmul.mubr.bf16.gmra.mrb[0].mxu0 %v952
      %v1078 = vpop.f32.mrb[0].mxu0
      %v1079 = vadd.f32 0.0, %v1078
      %v1080 = vpop.f32.mrb[0].mxu0
      %v1081 = vpop.f32.mrb[0].mxu0
      %v1082 = vadd.f32 0.0, %v1081
      %v1083 = vpop.f32.mrb[0].mxu0
      %1084 = vmatprep.mubr.bf16.mxu0 0
      %1085 = vmatmul.mubr.bf16.gmra.mrb[0].mxu0 %v953
      %v1086 = vpop.f32.mrb[0].mxu0
      %v1087 = vadd.f32 0.0, %v1086
      %v1088 = vpop.f32.mrb[0].mxu0
      %v1089 = vpop.f32.mrb[0].mxu0
      %v1090 = vadd.f32 0.0, %v1089
      %v1091 = vpop.f32.mrb[0].mxu0
      %1092 = vmatprep.mubr.bf16.mxu0 0
      %1093 = vmatmul.mubr.bf16.gmra.mrb[0].mxu0 %v954
      %v1094 = vpop.f32.mrb[0].mxu0
      %v1095 = vadd.f32 0.0, %v1094
      %v1096 = vpop.f32.mrb[0].mxu0
      %v1097 = vpop.f32.mrb[0].mxu0
      %v1098 = vadd.f32 0.0, %v1097
      %v1099 = vpop.f32.mrb[0].mxu0
      %1100 = vmatprep.mubr.bf16.mxu0 0
      %1101 = vmatmul.mubr.bf16.gmra.mrb[0].mxu0 %v955
      %v1102 = vpop.f32.mrb[0].mxu0
      %v1103 = vadd.f32 0.0, %v1102
      %v1104 = vpop.f32.mrb[0].mxu0
      %v1105 = vpop.f32.mrb[0].mxu0
      %v1106 = vadd.f32 0.0, %v1105
      %v1107 = vpop.f32.mrb[0].mxu0
      %1108 = vdwg.mxu0
      %v1157 = vunpack.c.l.b16 %v836
      %v1158 = vunpack.c.l.b16 %v837
      %v1159 = vunpack.c.l.b16 %v838
      %v1160 = vunpack.c.l.b16 %v839
      %v1161 = vunpack.c.l.b16 %v840
      %v1162 = vunpack.c.l.b16 %v841
      %v1163 = vunpack.c.l.b16 %v842
      %v1164 = vunpack.c.l.b16 %v843
      %v1165 = vunpack.c.l.b16 %v844
      %v1166 = vunpack.c.l.b16 %v845
      %v1167 = vunpack.c.l.b16 %v846
      %v1168 = vunpack.c.l.b16 %v847
      %v1169 = vunpack.c.l.b16 %v848
      %v1170 = vunpack.c.l.b16 %v849
      %v1171 = vunpack.c.l.b16 %v850
      %v1172 = vunpack.c.l.b16 %v851
      %v1173 = vunpack.c.l.b16 %v852
      %v1174 = vunpack.c.l.b16 %v853
      %v1175 = vunpack.c.l.b16 %v854
      %v1176 = vunpack.c.l.b16 %v855
      %v1177 = vunpack.c.l.b16 %v856
      %v1178 = vunpack.c.l.b16 %v857
      %v1179 = vunpack.c.l.b16 %v858
      %v1180 = vunpack.c.l.b16 %v859
      %v1181 = vunpack.c.l.b16 %v860
      %v1182 = vunpack.c.l.b16 %v861
      %v1183 = vunpack.c.l.b16 %v862
      %v1184 = vunpack.c.l.b16 %v863
      %v1185 = vunpack.c.l.b16 %v864
      %v1186 = vunpack.c.l.b16 %v865
      %v1187 = vunpack.c.l.b16 %v866
      %v1188 = vunpack.c.l.b16 %v867
      %v1189 = vunpack.c.l.b16 %v868
      %v1190 = vunpack.c.l.b16 %v869
      %v1191 = vunpack.c.l.b16 %v870
      %v1192 = vunpack.c.l.b16 %v871
      %v1193 = vunpack.c.l.b16 %v872
      %v1194 = vunpack.c.l.b16 %v873
      %v1195 = vunpack.c.l.b16 %v874
      %v1196 = vunpack.c.l.b16 %v875
      %v1197 = vunpack.c.l.b16 %v876
      %v1198 = vunpack.c.l.b16 %v877
      %v1199 = vunpack.c.l.b16 %v878
      %v1200 = vunpack.c.l.b16 %v879
      %v1201 = vunpack.c.l.b16 %v880
      %v1202 = vunpack.c.l.b16 %v881
      %v1203 = vunpack.c.l.b16 %v882
      %v1204 = vunpack.c.l.b16 %v883
      %v1205 = vpack.c.b16 %v1158, %v1157
      %v1206 = vpack.c.b16 %v1160, %v1159
      %v1207 = vpack.c.b16 %v1162, %v1161
      %v1208 = vpack.c.b16 %v1164, %v1163
      %v1209 = vpack.c.b16 %v1166, %v1165
      %v1210 = vpack.c.b16 %v1168, %v1167
      %v1211 = vpack.c.b16 %v1170, %v1169
      %v1212 = vpack.c.b16 %v1172, %v1171
      %v1213 = vpack.c.b16 %v1174, %v1173
      %v1214 = vpack.c.b16 %v1176, %v1175
      %v1215 = vpack.c.b16 %v1178, %v1177
      %v1216 = vpack.c.b16 %v1180, %v1179
      %v1217 = vpack.c.b16 %v1182, %v1181
      %v1218 = vpack.c.b16 %v1184, %v1183
      %v1219 = vpack.c.b16 %v1186, %v1185
      %v1220 = vpack.c.b16 %v1188, %v1187
      %v1221 = vpack.c.b16 %v1190, %v1189
      %v1222 = vpack.c.b16 %v1192, %v1191
      %v1223 = vpack.c.b16 %v1194, %v1193
      %v1224 = vpack.c.b16 %v1196, %v1195
      %v1225 = vpack.c.b16 %v1198, %v1197
      %v1226 = vpack.c.b16 %v1200, %v1199
      %v1227 = vpack.c.b16 %v1202, %v1201
      %v1228 = vpack.c.b16 %v1204, %v1203
      %1253 = vmatprep.subr.bf16.mxu0 0
      %1254 = vmatpush1.bf16.msra.mxu0 %v1205
      %1255 = vmatprep.subr.bf16.mxu0 0
      %1256 = vmatpush1.bf16.msra.mxu0 %v1206
      %1257 = vmatprep.subr.bf16.mxu0 0
      %1258 = vmatpush1.bf16.msra.mxu0 %v1207
      %1259 = vmatprep.subr.bf16.mxu0 0
      %1260 = vmatpush1.bf16.msra.mxu0 %v1208
      %1261 = vmatprep.subr.bf16.mxu0 0
      %1262 = vmatpush1.bf16.msra.mxu0 %v1209
      %1263 = vmatprep.subr.bf16.mxu0 0
      %1264 = vmatpush1.bf16.msra.mxu0 %v1210
      %1265 = vmatprep.subr.bf16.mxu0 0
      %1266 = vmatpush1.bf16.msra.mxu0 %v1211
      %1267 = vmatprep.subr.bf16.mxu0 0
      %1268 = vmatpush1.bf16.msra.mxu0 %v1212
      %1269 = vmatprep.subr.bf16.mxu0 0
      %1270 = vmatpush1.bf16.msra.mxu0 %v1213
      %1271 = vmatprep.subr.bf16.mxu0 0
      %1272 = vmatpush1.bf16.msra.mxu0 %v1214
      %1273 = vmatprep.subr.bf16.mxu0 0
      %1274 = vmatpush1.bf16.msra.mxu0 %v1215
      %1275 = vmatprep.subr.bf16.mxu0 0
      %1276 = vmatpush1.bf16.msra.mxu0 %v1216
      %1277 = vmatprep.subr.bf16.mxu0 0
      %1278 = vmatpush1.bf16.msra.mxu0 %v1217
      %1279 = vmatprep.subr.bf16.mxu0 0
      %1280 = vmatpush1.bf16.msra.mxu0 %v1218
      %1281 = vmatprep.subr.bf16.mxu0 0
      %1282 = vmatpush1.bf16.msra.mxu0 %v1219
      %1283 = vmatprep.subr.bf16.mxu0 0
      %1284 = vmatpush1.bf16.msra.mxu0 %v1220
      %1285 = vmatprep.mubr.bf16.mxu0 %v813
      %1286 = vmatmul.mubr.bf16.gmra.mrb[0].mxu0 %v812
      %v1287 = vpop.f32.mrb[0].mxu0
      %v1288 = vadd.f32 %v1047, %v1287
      %v1289 = vpop.f32.mrb[0].mxu0
      %v1290 = vpop.f32.mrb[0].mxu0
      %v1291 = vadd.f32 %v1050, %v1290
      %v1292 = vpop.f32.mrb[0].mxu0
      %1293 = vmatprep.mubr.bf16.mxu0 %v816
      %1294 = vmatmul.mubr.bf16.gmra.mrb[0].mxu0 %v815
      %v1295 = vpop.f32.mrb[0].mxu0
      %v1296 = vadd.f32 %v1055, %v1295
      %v1297 = vpop.f32.mrb[0].mxu0
      %v1298 = vpop.f32.mrb[0].mxu0
      %v1299 = vadd.f32 %v1058, %v1298
      %v1300 = vpop.f32.mrb[0].mxu0
      %1301 = vmatprep.mubr.bf16.mxu0 %v819
      %1302 = vmatmul.mubr.bf16.gmra.mrb[0].mxu0 %v818
      %v1303 = vpop.f32.mrb[0].mxu0
      %v1304 = vadd.f32 %v1063, %v1303
      %v1305 = vpop.f32.mrb[0].mxu0
      %v1306 = vpop.f32.mrb[0].mxu0
      %v1307 = vadd.f32 %v1066, %v1306
      %v1308 = vpop.f32.mrb[0].mxu0
      %1309 = vmatprep.mubr.bf16.mxu0 %v822
      %1310 = vmatmul.mubr.bf16.gmra.mrb[0].mxu0 %v821
      %v1311 = vpop.f32.mrb[0].mxu0
      %v1312 = vadd.f32 %v1071, %v1311
      %v1313 = vpop.f32.mrb[0].mxu0
      %v1314 = vpop.f32.mrb[0].mxu0
      %v1315 = vadd.f32 %v1074, %v1314
      %v1316 = vpop.f32.mrb[0].mxu0
      %1317 = vmatprep.mubr.bf16.mxu0 %v825
      %1318 = vmatmul.mubr.bf16.gmra.mrb[0].mxu0 %v824
      %v1319 = vpop.f32.mrb[0].mxu0
      %v1320 = vadd.f32 %v1079, %v1319
      %v1321 = vpop.f32.mrb[0].mxu0
      %v1322 = vpop.f32.mrb[0].mxu0
      %v1323 = vadd.f32 %v1082, %v1322
      %v1324 = vpop.f32.mrb[0].mxu0
      %1325 = vmatprep.mubr.bf16.mxu0 %v828
      %1326 = vmatmul.mubr.bf16.gmra.mrb[0].mxu0 %v827
      %v1327 = vpop.f32.mrb[0].mxu0
      %v1328 = vadd.f32 %v1087, %v1327
      %v1329 = vpop.f32.mrb[0].mxu0
      %v1330 = vpop.f32.mrb[0].mxu0
      %v1331 = vadd.f32 %v1090, %v1330
      %v1332 = vpop.f32.mrb[0].mxu0
      %1333 = vmatprep.mubr.bf16.mxu0 %v831
      %1334 = vmatmul.mubr.bf16.gmra.mrb[0].mxu0 %v830
      %v1335 = vpop.f32.mrb[0].mxu0
      %v1336 = vadd.f32 %v1095, %v1335
      %v1337 = vpop.f32.mrb[0].mxu0
      %v1338 = vpop.f32.mrb[0].mxu0
      %v1339 = vadd.f32 %v1098, %v1338
      %v1340 = vpop.f32.mrb[0].mxu0
      %1341 = vmatprep.mubr.bf16.mxu0 %v834
      %1342 = vmatmul.mubr.bf16.gmra.mrb[0].mxu0 %v833
      %v1343 = vpop.f32.mrb[0].mxu0
      %v1344 = vadd.f32 %v1103, %v1343
      %v1345 = vpop.f32.mrb[0].mxu0
      %v1346 = vpop.f32.mrb[0].mxu0
      %v1347 = vadd.f32 %v1106, %v1346
      %v1348 = vpop.f32.mrb[0].mxu0
      %1349 = vdwg.mxu0
      %1350 = vmatprep.subr.bf16.mxu0 0
      %1351 = vmatpush1.bf16.msra.mxu0 %v1221
      %1352 = vmatprep.subr.bf16.mxu0 0
      %1353 = vmatpush1.bf16.msra.mxu0 %v1222
      %1354 = vmatprep.subr.bf16.mxu0 0
      %1355 = vmatpush1.bf16.msra.mxu0 %v1223
      %1356 = vmatprep.subr.bf16.mxu0 0
      %1357 = vmatpush1.bf16.msra.mxu0 %v1224
      %1358 = vmatprep.subr.bf16.mxu0 0
      %1359 = vmatpush1.bf16.msra.mxu0 %v1225
      %1360 = vmatprep.subr.bf16.mxu0 0
      %1361 = vmatpush1.bf16.msra.mxu0 %v1226
      %1362 = vmatprep.subr.bf16.mxu0 0
      %1363 = vmatpush1.bf16.msra.mxu0 %v1227
      %1364 = vmatprep.subr.bf16.mxu0 0
      %1365 = vmatpush1.bf16.msra.mxu0 %v1228
      %1366 = vmatprep.subr.bf16.mxu0 0
      %1367 = vmatpush1.bf16.msra.mxu0 0
      %1368 = vmatprep.subr.bf16.mxu0 0
      %1369 = vmatpush1.bf16.msra.mxu0 0
      %1370 = vmatprep.subr.bf16.mxu0 0
      %1371 = vmatpush1.bf16.msra.mxu0 0
      %1372 = vmatprep.subr.bf16.mxu0 0
      %1373 = vmatpush1.bf16.msra.mxu0 0
      %1374 = vmatprep.subr.bf16.mxu0 0
      %1375 = vmatpush1.bf16.msra.mxu0 0
      %1376 = vmatprep.subr.bf16.mxu0 0
      %1377 = vmatpush1.bf16.msra.mxu0 0
      %1378 = vmatprep.subr.bf16.mxu0 0
      %1379 = vmatpush1.bf16.msra.mxu0 0
      %1380 = vmatprep.subr.bf16.mxu0 0
      %1381 = vmatpush1.bf16.msra.mxu0 0
      %1382 = vmatprep.mubr.bf16.mxu0 0
      %1383 = vmatmul.mubr.bf16.gmra.mrb[0].mxu0 %v814
      %v1384 = vpop.f32.mrb[0].mxu0
      %v1385 = vadd.f32 %v1288, %v1384
      %v1386 = vpop.f32.mrb[0].mxu0
      %v1387 = vpop.f32.mrb[0].mxu0
      %v1388 = vadd.f32 %v1291, %v1387
      %v1389 = vpop.f32.mrb[0].mxu0
      %1390 = vmatprep.mubr.bf16.mxu0 0
      %1391 = vmatmul.mubr.bf16.gmra.mrb[0].mxu0 %v817
      %v1392 = vpop.f32.mrb[0].mxu0
      %v1393 = vadd.f32 %v1296, %v1392
      %v1394 = vpop.f32.mrb[0].mxu0
      %v1395 = vpop.f32.mrb[0].mxu0
      %v1396 = vadd.f32 %v1299, %v1395
      %v1397 = vpop.f32.mrb[0].mxu0
      %1398 = vmatprep.mubr.bf16.mxu0 0
      %1399 = vmatmul.mubr.bf16.gmra.mrb[0].mxu0 %v820
      %v1400 = vpop.f32.mrb[0].mxu0
      %v1401 = vadd.f32 %v1304, %v1400
      %v1402 = vpop.f32.mrb[0].mxu0
      %v1403 = vpop.f32.mrb[0].mxu0
      %v1404 = vadd.f32 %v1307, %v1403
      %v1405 = vpop.f32.mrb[0].mxu0
      %1406 = vmatprep.mubr.bf16.mxu0 0
      %1407 = vmatmul.mubr.bf16.gmra.mrb[0].mxu0 %v823
      %v1408 = vpop.f32.mrb[0].mxu0
      %v1409 = vadd.f32 %v1312, %v1408
      %v1410 = vpop.f32.mrb[0].mxu0
      %v1411 = vpop.f32.mrb[0].mxu0
      %v1412 = vadd.f32 %v1315, %v1411
      %v1413 = vpop.f32.mrb[0].mxu0
      %1414 = vmatprep.mubr.bf16.mxu0 0
      %1415 = vmatmul.mubr.bf16.gmra.mrb[0].mxu0 %v826
      %v1416 = vpop.f32.mrb[0].mxu0
      %v1417 = vadd.f32 %v1320, %v1416
      %v1418 = vpop.f32.mrb[0].mxu0
      %v1419 = vpop.f32.mrb[0].mxu0
      %v1420 = vadd.f32 %v1323, %v1419
      %v1421 = vpop.f32.mrb[0].mxu0
      %1422 = vmatprep.mubr.bf16.mxu0 0
      %1423 = vmatmul.mubr.bf16.gmra.mrb[0].mxu0 %v829
      %v1424 = vpop.f32.mrb[0].mxu0
      %v1425 = vadd.f32 %v1328, %v1424
      %v1426 = vpop.f32.mrb[0].mxu0
      %v1427 = vpop.f32.mrb[0].mxu0
      %v1428 = vadd.f32 %v1331, %v1427
      %v1429 = vpop.f32.mrb[0].mxu0
      %1430 = vmatprep.mubr.bf16.mxu0 0
      %1431 = vmatmul.mubr.bf16.gmra.mrb[0].mxu0 %v832
      %v1432 = vpop.f32.mrb[0].mxu0
      %v1433 = vadd.f32 %v1336, %v1432
      %v1434 = vpop.f32.mrb[0].mxu0
      %v1435 = vpop.f32.mrb[0].mxu0
      %v1436 = vadd.f32 %v1339, %v1435
      %v1437 = vpop.f32.mrb[0].mxu0
      %1438 = vmatprep.mubr.bf16.mxu0 0
      %1439 = vmatmul.mubr.bf16.gmra.mrb[0].mxu0 %v835
      %v1440 = vpop.f32.mrb[0].mxu0
      %v1441 = vadd.f32 %v1344, %v1440
      %v1442 = vpop.f32.mrb[0].mxu0
      %v1443 = vpop.f32.mrb[0].mxu0
      %v1444 = vadd.f32 %v1347, %v1443
      %v1445 = vpop.f32.mrb[0].mxu0
      %1446 = vdwg.mxu0
      %v1447 = vld [vmem:[%s6] sm:$0x1]
      %v1449 = vlaneseq
      %v1450 = vshrl.u32 %v1449, 7
      %v1451 = vsub.s32 0, %v1450
      %v1452 = vrot.slane %v1447, %v1451
      %v1454 = vadd.f32 %v1385, %v1452
      %v1455 = vadd.f32 %v1388, %v1452
      %v1456 = vadd.f32 %v1393, %v1452
      %v1457 = vadd.f32 %v1396, %v1452
      %v1458 = vadd.f32 %v1401, %v1452
      %v1459 = vadd.f32 %v1404, %v1452
      %v1460 = vadd.f32 %v1409, %v1452
      %v1461 = vadd.f32 %v1412, %v1452
      %v1462 = vadd.f32 %v1417, %v1452
      %v1463 = vadd.f32 %v1420, %v1452
      %v1464 = vadd.f32 %v1425, %v1452
      %v1465 = vadd.f32 %v1428, %v1452
      %v1466 = vadd.f32 %v1433, %v1452
      %v1467 = vadd.f32 %v1436, %v1452
      %v1468 = vadd.f32 %v1441, %v1452
      %v1469 = vadd.f32 %v1444, %v1452
      %1470 = vst [vmem:[%s8] sm:$0xff] %v1454
      %1471 = vst [vmem:[%s8 + $0x8] sm:$0xff] %v1455
      %1472 = vst [vmem:[%s8 + $0x10] sm:$0xff] %v1456
      %1473 = vst [vmem:[%s8 + $0x18] sm:$0xff] %v1457
      %1474 = vst [vmem:[%s8 + $0x20] sm:$0xff] %v1458
      %1475 = vst [vmem:[%s8 + $0x28] sm:$0xff] %v1459
      %1476 = vst [vmem:[%s8 + $0x30] sm:$0xff] %v1460
      %1477 = vst [vmem:[%s8 + $0x38] sm:$0xff] %v1461
      %1478 = vst [vmem:[%s8 + $0x40] sm:$0xff] %v1462
      %1479 = vst [vmem:[%s8 + $0x48] sm:$0xff] %v1463
      %1480 = vst [vmem:[%s8 + $0x50] sm:$0xff] %v1464
      %1481 = vst [vmem:[%s8 + $0x58] sm:$0xff] %v1465
      %1482 = vst [vmem:[%s8 + $0x60] sm:$0xff] %v1466
      %1483 = vst [vmem:[%s8 + $0x68] sm:$0xff] %v1467
      %1484 = vst [vmem:[%s8 + $0x70] sm:$0xff] %v1468
      %1485 = vst [vmem:[%s8 + $0x78] sm:$0xff] %v1469
    $region53: #{rgcn_conv_pallas.1} parent=1 // pred_fallthru
      _
    // Predicated region
    $region54: #{rgcn_conv_pallas.1} parent=1 // pred_check
      _
    $region55: #{rgcn_conv_pallas.1} parent=1 // pred_check_branch
      %1487 = sbr.rel (0) target = $region57
    $region56: #{rgcn_conv_pallas.1} parent=1 // pred_region
      _
    $region57: #{rgcn_conv_pallas.1} parent=1 // pred_fallthru
      _
    // Predicated region
    $region58: #{rgcn_conv_pallas.1} parent=1 // pred_check
      _
    $region59: #{rgcn_conv_pallas.1} parent=1 // pred_check_branch
      %1489 = sbr.rel (0) target = $region61
    $region60: #{rgcn_conv_pallas.1} parent=1 // pred_region
      _
    $region61: #{rgcn_conv_pallas.1} parent=1 // pred_fallthru
      _
    %1490 = vsyncpa [#allocation6], 1
    %1491 = vsyncpa [#allocation8], 1

</llo_original>
